<compile_context>
chip_gen: v5e
topology: v5e:2x2
jax: 0.10.0
libtpu: 0.0.40
codegen_flags: <defaults>
</compile_context>

<pallas_src>
import functools

import jax
import jax.numpy as jnp
from jax import lax
from jax.experimental import pallas as pl
from jax.experimental.pallas import tpu as pltpu


def _round_up(x, m):
    return (x + m - 1) // m * m


def _fo_pool(z, f, o, c0, h_ref, T):
    """QRNN fo-pooling with pre-computed gates.

    z, f, o: (T, B, H) f32 (nonlinearities already applied, vectorized over all steps).
    c0:      (B, H) initial cell state.
    h_ref:   (T, B, H) VMEM scratch; h_t is written per step (bounds live ranges).
    Returns the final cell state (B, H).
    """
    fz = (1.0 - f) * z                 # hoisted out of the recurrence
    c = c0
    for t in range(T):                 # static unroll; 3 VPU ops per step stay serial
        c = f[t] * c + fz[t]
        h_ref[t] = o[t] * c
    return c


def decoder_kernel(ids_ref, emb_ref, cinit_ref, enc_ref, mask_ref,
                   memb_ref, mh0_ref, mh1_ref,
                   w0_ref, b0_ref, w1_ref, b1_ref,
                   wactx_ref, wax_ref, ba_ref, wl_ref, bl_ref,
                   probs_ref, cout_ref, attn_ref,
                   h_ref,
                   *, T, B, H):
    f32 = jnp.float32
    bf16 = jnp.bfloat16
    TB = T * B
    V = emb_ref.shape[0]

    # ---- embedding (one-hot matmul on the MXU, bf16 in / f32 acc) + dropout ----
    ids = ids_ref[...]                                            # (TB, 1) int32
    col = lax.broadcasted_iota(jnp.int32, (TB, V), 1)
    onehot = jnp.where(ids == col, 1.0, 0.0).astype(bf16)         # (TB, V)
    x = jnp.dot(onehot, emb_ref[...], preferred_element_type=f32)  # (TB, E) f32
    x = x * memb_ref[...]                                         # inverted dropout

    # ---- QRNN layer 0 (kernel_size=1 conv == linear to 3H gates) ----
    g = jnp.dot(x.astype(bf16), w0_ref[...], preferred_element_type=f32) + b0_ref[...]
    z = jnp.tanh(g[:, :H]).reshape(T, B, H)
    fg = jax.nn.sigmoid(g[:, H:2 * H]).reshape(T, B, H)
    og = jax.nn.sigmoid(g[:, 2 * H:]).reshape(T, B, H)
    c0_out = _fo_pool(z, fg, og, cinit_ref[0], h_ref, T)
    h0 = h_ref[...].reshape(TB, H) * mh0_ref[...]                 # dropped layer-0 output

    # ---- QRNN layer 1 ----
    g = jnp.dot(h0.astype(bf16), w1_ref[...], preferred_element_type=f32) + b1_ref[...]
    z = jnp.tanh(g[:, :H]).reshape(T, B, H)
    fg = jax.nn.sigmoid(g[:, H:2 * H]).reshape(T, B, H)
    og = jax.nn.sigmoid(g[:, 2 * H:]).reshape(T, B, H)
    c1_out = _fo_pool(z, fg, og, cinit_ref[1], h_ref, T)
    x2 = h_ref[...].reshape(TB, H) * mh1_ref[...]                 # dropped layer-1 output

    cout_ref[0] = c0_out
    cout_ref[1] = c1_out

    # ---- masked dot-product attention (encoder is pre-transposed/padded to (B, Sp, H)) ----
    xb = jnp.swapaxes(x2.reshape(T, B, H), 0, 1)                  # (B, T, H)
    eb = enc_ref[...]                                             # (B, Sp, H) bf16
    scores = jnp.einsum('bth,bsh->bts', xb.astype(bf16), eb,
                        preferred_element_type=f32)               # (B, T, Sp)
    mask = mask_ref[...]                                          # (B, Sp) f32 (0 on pads)
    scores = jnp.where(mask[:, None, :] > 0, scores, f32(-1e9))
    m = jnp.max(scores, axis=-1, keepdims=True)
    e = jnp.exp(scores - m)
    attn = e * (1.0 / jnp.sum(e, axis=-1, keepdims=True))         # (B, T, Sp), pads are 0
    Sp = eb.shape[1]
    attn_ref[...] = attn.reshape(B * T, Sp)                       # lane-dense store

    # ---- context, tanh(attn_linear([ctx; x])), final linear (all batch-first) ----
    ctx = jnp.einsum('bts,bsh->bth', attn.astype(bf16), eb,
                     preferred_element_type=f32)                  # (B, T, H)
    ctxf = ctx.reshape(B * T, H)
    xbf = xb.reshape(B * T, H)
    xa = jnp.tanh(
        jnp.dot(ctxf.astype(bf16), wactx_ref[...], preferred_element_type=f32)
        + jnp.dot(xbf.astype(bf16), wax_ref[...], preferred_element_type=f32)
        + ba_ref[...])                                            # (B*T, H)
    probs = jnp.dot(xa.astype(bf16), wl_ref[...],
                    preferred_element_type=f32) + bl_ref[...]     # (B*T, Vp)
    probs_ref[...] = probs                                        # lane-dense store


def decoder_forward(params, ids, c_init, encoder_out, mask, dropout_key,
                    *, p=0.2, training=True):
    T, B = ids.shape
    S, _, H = encoder_out.shape
    V, E = params['emb'].shape
    TB = T * B
    Sp = _round_up(S, 128)
    Vp = _round_up(V, 128)
    f32, bf16 = jnp.float32, jnp.bfloat16

    # Dropout keep-masks (inverted dropout, matches torch dropout(training=True)),
    # single batched draw, generated host-side (no in-kernel PRNG needed).
    if training and p > 0.0:
        u = jax.random.uniform(dropout_key, (TB, E + 2 * H), f32)
        keep = (u >= p).astype(f32) * (1.0 / (1.0 - p))
    else:
        keep = jnp.ones((TB, E + 2 * H), f32)
    m_emb = keep[:, :E]
    m_h0 = keep[:, E:E + H]
    m_h1 = keep[:, E + H:]

    # Batch-first + lane-padded encoder and mask (transposes/pads done outside the kernel).
    enc_bf = jnp.swapaxes(encoder_out, 0, 1)                              # (B, S, H)
    enc_pad = jnp.pad(enc_bf, ((0, 0), (0, Sp - S), (0, 0))).astype(bf16)  # (B, Sp, H)
    mask_pad = jnp.pad(mask.astype(f32), ((0, 0), (0, Sp - S)))            # (B, Sp)

    # bf16 weights for the MXU (f32 accumulation in-kernel); vocab dim padded to 128.
    emb = params['emb'].astype(bf16)
    w0 = params['w0'].astype(bf16)
    w1 = params['w1'].astype(bf16)
    wa_ctx = params['wa'][:H].astype(bf16)   # attn_linear split: cat([ctx, x]) @ wa
    wa_x = params['wa'][H:].astype(bf16)     #   == ctx @ wa[:H] + x @ wa[H:]
    wl = jnp.pad(params['wl'], ((0, 0), (0, Vp - V))).astype(bf16)
    b0 = params['b0'].astype(f32)
    b1 = params['b1'].astype(f32)
    ba = params['ba'].astype(f32)
    bl = jnp.pad(params['bl'], ((0, 0), (0, Vp - V))).astype(f32)

    ids_flat = ids.reshape(TB, 1).astype(jnp.int32)

    kernel = functools.partial(decoder_kernel, T=T, B=B, H=H)
    vmem = pl.BlockSpec(memory_space=pltpu.MemorySpace.VMEM)
    out_shapes = (
        jax.ShapeDtypeStruct((B * T, Vp), f32),   # probs (batch-first, lane-dense, padded V)
        jax.ShapeDtypeStruct((2, B, H), f32),     # stacked c_out list
        jax.ShapeDtypeStruct((B * T, Sp), f32),   # attention (batch-first, lane-dense, padded S)
    )
    probs_p, c_out, attn_p = pl.pallas_call(
        kernel,
        out_shape=out_shapes,
        in_specs=[vmem] * 17,
        out_specs=(vmem, vmem, vmem),
        scratch_shapes=[pltpu.VMEM((T, B, H), f32)],   # shared h scratch for both QRNN layers
    )(ids_flat, emb, c_init.astype(f32), enc_pad, mask_pad,
      m_emb, m_h0, m_h1,
      w0, b0, w1, b1, wa_ctx, wa_x, ba, wl, bl)

    # Un-pad / restore the module's (seq_len, batch, ...) layout outside the kernel.
    probs = probs_p.reshape(B, T, Vp)[:, :, :V].transpose(1, 0, 2)   # (T, B, V)
    attn = attn_p.reshape(B, T, Sp)[:, :, :S]                        # (B, T, S)
    return probs, c_out, attn


def init_params(key, V, E, H):
    ks = jax.random.split(key, 5)
    s = 0.1
    return {
        'emb': jax.random.normal(ks[0], (V, E), jnp.float32) * s,
        'w0':  jax.random.normal(ks[1], (E, 3 * H), jnp.float32) * s,
        'b0':  jnp.zeros((1, 3 * H), jnp.float32),
        'w1':  jax.random.normal(ks[2], (H, 3 * H), jnp.float32) * s,
        'b1':  jnp.zeros((1, 3 * H), jnp.float32),
        'wa':  jax.random.normal(ks[3], (2 * H, H), jnp.float32) * s,
        'ba':  jnp.zeros((1, H), jnp.float32),
        'wl':  jax.random.normal(ks[4], (H, V), jnp.float32) * s,
        'bl':  jnp.zeros((1, V), jnp.float32),
    }


if __name__ == "__main__":
    # small shapes consistent with the module defaults
    T, B, S = 8, 2, 8          # target seq len, batch, source (encoder) seq len
    V, E, H = 60, 32, 64       # dict_size, embedding_size, hidden_size
    P = 0.2                    # dropout_p

    key = jax.random.PRNGKey(0)
    k_ids, k_c, k_enc, k_param, k_drop = jax.random.split(key, 5)

    params = init_params(k_param, V, E, H)
    ids = jax.random.randint(k_ids, (T, B), 0, V, dtype=jnp.int32)        # token ids (T, B)
    c_init = jax.random.normal(k_c, (2, B, H), jnp.float32) * 0.1         # per-layer init states
    encoder_out = jax.random.normal(k_enc, (S, B, H), jnp.float32) * 0.1  # (S, B, H)
    mask = jnp.ones((B, S), jnp.float32).at[:, -1].set(0.0)               # pad mask (B, S)

    probs, c_out, attn = decoder_forward(
        params, ids, c_init, encoder_out, mask, k_drop, p=P, training=True)

    jax.block_until_ready((probs, c_out, attn))
    assert probs.shape == (T, B, V)
    assert c_out.shape == (2, B, H)
    assert attn.shape == (B, T, S)
    assert bool(jnp.all(jnp.isfinite(probs)))
    assert bool(jnp.all(jnp.abs(jnp.sum(attn, axis=-1) - 1.0) < 1e-3))
    print("KERNEL_OK")
</pallas_src>

<mosaic_0001>
module attributes {stable_mosaic.version = 11 : i64} {
  func.func @decoder_kernel(%arg0: memref<16x1xi32, #tpu.memory_space<vmem>>, %arg1: memref<60x32xbf16, #tpu.memory_space<vmem>>, %arg2: memref<2x2x64xf32, #tpu.memory_space<vmem>>, %arg3: memref<2x128x64xbf16, #tpu.memory_space<vmem>>, %arg4: memref<2x128xf32, #tpu.memory_space<vmem>>, %arg5: memref<16x32xf32, #tpu.memory_space<vmem>>, %arg6: memref<16x64xf32, #tpu.memory_space<vmem>>, %arg7: memref<16x64xf32, #tpu.memory_space<vmem>>, %arg8: memref<32x192xbf16, #tpu.memory_space<vmem>>, %arg9: memref<1x192xf32, #tpu.memory_space<vmem>>, %arg10: memref<64x192xbf16, #tpu.memory_space<vmem>>, %arg11: memref<1x192xf32, #tpu.memory_space<vmem>>, %arg12: memref<64x64xbf16, #tpu.memory_space<vmem>>, %arg13: memref<64x64xbf16, #tpu.memory_space<vmem>>, %arg14: memref<1x64xf32, #tpu.memory_space<vmem>>, %arg15: memref<64x128xbf16, #tpu.memory_space<vmem>>, %arg16: memref<1x128xf32, #tpu.memory_space<vmem>>, %arg17: memref<16x128xf32, #tpu.memory_space<vmem>>, %arg18: memref<2x2x64xf32, #tpu.memory_space<vmem>>, %arg19: memref<16x128xf32, #tpu.memory_space<vmem>>, %arg20: memref<8x2x64xf32, #tpu.memory_space<vmem>>) attributes {dimension_semantics = [], scalar_prefetch = 0 : i64, scratch_operands = 1 : i64, tpu.core_type = #tpu.core_type<tc>} {
    %c0 = arith.constant 0 : index
    %c0_0 = arith.constant 0 : index
    %0 = vector.load %arg0[%c0, %c0_0] : memref<16x1xi32, #tpu.memory_space<vmem>>, vector<16x1xi32>
    %1 = tpu.iota {dimensions = array<i32: 1>} : vector<16x60xi32>
    %2 = vector.broadcast %0 : vector<16x1xi32> to vector<16x60xi32>
    %3 = arith.cmpi eq, %2, %1 : vector<16x60xi32>
    %cst = arith.constant 1.000000e+00 : f32
    %cst_1 = arith.constant 0.000000e+00 : f32
    %4 = vector.broadcast %cst : f32 to vector<16x60xf32>
    %5 = vector.broadcast %cst_1 : f32 to vector<16x60xf32>
    %6 = arith.select %3, %4, %5 : vector<16x60xi1>, vector<16x60xf32>
    %7 = arith.truncf %6 : vector<16x60xf32> to vector<16x60xbf16>
    %c0_2 = arith.constant 0 : index
    %c0_3 = arith.constant 0 : index
    %8 = vector.load %arg1[%c0_2, %c0_3] : memref<60x32xbf16, #tpu.memory_space<vmem>>, vector<60x32xbf16>
    %cst_4 = arith.constant dense<0.000000e+00> : vector<16x32xf32>
    %9 = tpu.matmul %7, %8, %cst_4 {dimension_numbers = #tpu.dot_dimension_numbers<[1], [0], [0], [1], [0, 0, 1, 1], [], []>} : vector<16x60xbf16>, vector<60x32xbf16>, vector<16x32xf32> -> vector<16x32xf32>
    %c0_5 = arith.constant 0 : index
    %c0_6 = arith.constant 0 : index
    %10 = vector.load %arg5[%c0_5, %c0_6] : memref<16x32xf32, #tpu.memory_space<vmem>>, vector<16x32xf32>
    %11 = arith.mulf %9, %10 : vector<16x32xf32>
    %12 = arith.truncf %11 : vector<16x32xf32> to vector<16x32xbf16>
    %c0_7 = arith.constant 0 : index
    %c0_8 = arith.constant 0 : index
    %13 = vector.load %arg8[%c0_7, %c0_8] : memref<32x192xbf16, #tpu.memory_space<vmem>>, vector<32x192xbf16>
    %cst_9 = arith.constant dense<0.000000e+00> : vector<16x192xf32>
    %14 = tpu.matmul %12, %13, %cst_9 {dimension_numbers = #tpu.dot_dimension_numbers<[1], [0], [0], [1], [0, 0, 1, 1], [], []>} : vector<16x32xbf16>, vector<32x192xbf16>, vector<16x192xf32> -> vector<16x192xf32>
    %c0_10 = arith.constant 0 : index
    %c0_11 = arith.constant 0 : index
    %15 = vector.load %arg9[%c0_10, %c0_11] : memref<1x192xf32, #tpu.memory_space<vmem>>, vector<1x192xf32>
    %16 = vector.broadcast %15 : vector<1x192xf32> to vector<16x192xf32>
    %17 = arith.addf %14, %16 : vector<16x192xf32>
    %18 = vector.extract_strided_slice %17 {offsets = [0, 0], sizes = [16, 64], strides = [1, 1]} : vector<16x192xf32> to vector<16x64xf32>
    %19 = math.tanh %18 : vector<16x64xf32>
    %20 = vector.shape_cast %19 : vector<16x64xf32> to vector<8x2x64xf32>
    %21 = vector.extract_strided_slice %17 {offsets = [0, 64], sizes = [16, 64], strides = [1, 1]} : vector<16x192xf32> to vector<16x64xf32>
    %22 = arith.negf %21 : vector<16x64xf32>
    %23 = math.exp %22 : vector<16x64xf32>
    %cst_12 = arith.constant 1.000000e+00 : f32
    %24 = vector.broadcast %cst_12 : f32 to vector<16x64xf32>
    %25 = arith.addf %24, %23 : vector<16x64xf32>
    %26 = arith.divf %24, %25 : vector<16x64xf32>
    %27 = vector.shape_cast %26 : vector<16x64xf32> to vector<8x2x64xf32>
    %28 = vector.extract_strided_slice %17 {offsets = [0, 128], sizes = [16, 64], strides = [1, 1]} : vector<16x192xf32> to vector<16x64xf32>
    %29 = arith.negf %28 : vector<16x64xf32>
    %30 = math.exp %29 : vector<16x64xf32>
    %cst_13 = arith.constant 1.000000e+00 : f32
    %31 = vector.broadcast %cst_13 : f32 to vector<16x64xf32>
    %32 = arith.addf %31, %30 : vector<16x64xf32>
    %33 = arith.divf %31, %32 : vector<16x64xf32>
    %34 = vector.shape_cast %33 : vector<16x64xf32> to vector<8x2x64xf32>
    %c0_14 = arith.constant 0 : index
    %c0_15 = arith.constant 0 : index
    %c0_16 = arith.constant 0 : index
    %35 = vector.load %arg2[%c0_14, %c0_15, %c0_16] : memref<2x2x64xf32, #tpu.memory_space<vmem>>, vector<1x2x64xf32>
    %36 = vector.shape_cast %35 : vector<1x2x64xf32> to vector<2x64xf32>
    %cst_17 = arith.constant 1.000000e+00 : f32
    %37 = vector.broadcast %cst_17 : f32 to vector<8x2x64xf32>
    %38 = arith.subf %37, %27 : vector<8x2x64xf32>
    %39 = arith.mulf %38, %20 : vector<8x2x64xf32>
    %40 = vector.extract_strided_slice %27 {offsets = [0, 0, 0], sizes = [1, 2, 64], strides = [1, 1, 1]} : vector<8x2x64xf32> to vector<1x2x64xf32>
    %41 = vector.shape_cast %40 : vector<1x2x64xf32> to vector<2x64xf32>
    %42 = arith.mulf %41, %36 : vector<2x64xf32>
    %43 = vector.extract_strided_slice %39 {offsets = [0, 0, 0], sizes = [1, 2, 64], strides = [1, 1, 1]} : vector<8x2x64xf32> to vector<1x2x64xf32>
    %44 = vector.shape_cast %43 : vector<1x2x64xf32> to vector<2x64xf32>
    %45 = arith.addf %42, %44 : vector<2x64xf32>
    %46 = vector.extract_strided_slice %34 {offsets = [0, 0, 0], sizes = [1, 2, 64], strides = [1, 1, 1]} : vector<8x2x64xf32> to vector<1x2x64xf32>
    %47 = vector.shape_cast %46 : vector<1x2x64xf32> to vector<2x64xf32>
    %48 = arith.mulf %47, %45 : vector<2x64xf32>
    %c0_18 = arith.constant 0 : index
    %c0_19 = arith.constant 0 : index
    %c0_20 = arith.constant 0 : index
    %49 = vector.load %arg20[%c0_18, %c0_19, %c0_20] : memref<8x2x64xf32, #tpu.memory_space<vmem>>, vector<1x2x64xf32>
    %50 = vector.shape_cast %49 : vector<1x2x64xf32> to vector<2x64xf32>
    %51 = vector.shape_cast %48 : vector<2x64xf32> to vector<1x2x64xf32>
    tpu.vector_store %arg20[%c0_18, %c0_19, %c0_20], %51 {strides = array<i32>} : memref<8x2x64xf32, #tpu.memory_space<vmem>>, vector<1x2x64xf32>,
    %52 = vector.extract_strided_slice %27 {offsets = [1, 0, 0], sizes = [1, 2, 64], strides = [1, 1, 1]} : vector<8x2x64xf32> to vector<1x2x64xf32>
    %53 = vector.shape_cast %52 : vector<1x2x64xf32> to vector<2x64xf32>
    %54 = arith.mulf %53, %45 : vector<2x64xf32>
    %55 = vector.extract_strided_slice %39 {offsets = [1, 0, 0], sizes = [1, 2, 64], strides = [1, 1, 1]} : vector<8x2x64xf32> to vector<1x2x64xf32>
    %56 = vector.shape_cast %55 : vector<1x2x64xf32> to vector<2x64xf32>
    %57 = arith.addf %54, %56 : vector<2x64xf32>
    %58 = vector.extract_strided_slice %34 {offsets = [1, 0, 0], sizes = [1, 2, 64], strides = [1, 1, 1]} : vector<8x2x64xf32> to vector<1x2x64xf32>
    %59 = vector.shape_cast %58 : vector<1x2x64xf32> to vector<2x64xf32>
    %60 = arith.mulf %59, %57 : vector<2x64xf32>
    %c1 = arith.constant 1 : index
    %c0_21 = arith.constant 0 : index
    %c0_22 = arith.constant 0 : index
    %61 = vector.load %arg20[%c1, %c0_21, %c0_22] : memref<8x2x64xf32, #tpu.memory_space<vmem>>, vector<1x2x64xf32>
    %62 = vector.shape_cast %61 : vector<1x2x64xf32> to vector<2x64xf32>
    %63 = vector.shape_cast %60 : vector<2x64xf32> to vector<1x2x64xf32>
    tpu.vector_store %arg20[%c1, %c0_21, %c0_22], %63 {strides = array<i32>} : memref<8x2x64xf32, #tpu.memory_space<vmem>>, vector<1x2x64xf32>,
    %64 = vector.extract_strided_slice %27 {offsets = [2, 0, 0], sizes = [1, 2, 64], strides = [1, 1, 1]} : vector<8x2x64xf32> to vector<1x2x64xf32>
    %65 = vector.shape_cast %64 : vector<1x2x64xf32> to vector<2x64xf32>
    %66 = arith.mulf %65, %57 : vector<2x64xf32>
    %67 = vector.extract_strided_slice %39 {offsets = [2, 0, 0], sizes = [1, 2, 64], strides = [1, 1, 1]} : vector<8x2x64xf32> to vector<1x2x64xf32>
    %68 = vector.shape_cast %67 : vector<1x2x64xf32> to vector<2x64xf32>
    %69 = arith.addf %66, %68 : vector<2x64xf32>
    %70 = vector.extract_strided_slice %34 {offsets = [2, 0, 0], sizes = [1, 2, 64], strides = [1, 1, 1]} : vector<8x2x64xf32> to vector<1x2x64xf32>
    %71 = vector.shape_cast %70 : vector<1x2x64xf32> to vector<2x64xf32>
    %72 = arith.mulf %71, %69 : vector<2x64xf32>
    %c2 = arith.constant 2 : index
    %c0_23 = arith.constant 0 : index
    %c0_24 = arith.constant 0 : index
    %73 = vector.load %arg20[%c2, %c0_23, %c0_24] : memref<8x2x64xf32, #tpu.memory_space<vmem>>, vector<1x2x64xf32>
    %74 = vector.shape_cast %73 : vector<1x2x64xf32> to vector<2x64xf32>
    %75 = vector.shape_cast %72 : vector<2x64xf32> to vector<1x2x64xf32>
    tpu.vector_store %arg20[%c2, %c0_23, %c0_24], %75 {strides = array<i32>} : memref<8x2x64xf32, #tpu.memory_space<vmem>>, vector<1x2x64xf32>,
    %76 = vector.extract_strided_slice %27 {offsets = [3, 0, 0], sizes = [1, 2, 64], strides = [1, 1, 1]} : vector<8x2x64xf32> to vector<1x2x64xf32>
    %77 = vector.shape_cast %76 : vector<1x2x64xf32> to vector<2x64xf32>
    %78 = arith.mulf %77, %69 : vector<2x64xf32>
    %79 = vector.extract_strided_slice %39 {offsets = [3, 0, 0], sizes = [1, 2, 64], strides = [1, 1, 1]} : vector<8x2x64xf32> to vector<1x2x64xf32>
    %80 = vector.shape_cast %79 : vector<1x2x64xf32> to vector<2x64xf32>
    %81 = arith.addf %78, %80 : vector<2x64xf32>
    %82 = vector.extract_strided_slice %34 {offsets = [3, 0, 0], sizes = [1, 2, 64], strides = [1, 1, 1]} : vector<8x2x64xf32> to vector<1x2x64xf32>
    %83 = vector.shape_cast %82 : vector<1x2x64xf32> to vector<2x64xf32>
    %84 = arith.mulf %83, %81 : vector<2x64xf32>
    %c3 = arith.constant 3 : index
    %c0_25 = arith.constant 0 : index
    %c0_26 = arith.constant 0 : index
    %85 = vector.load %arg20[%c3, %c0_25, %c0_26] : memref<8x2x64xf32, #tpu.memory_space<vmem>>, vector<1x2x64xf32>
    %86 = vector.shape_cast %85 : vector<1x2x64xf32> to vector<2x64xf32>
    %87 = vector.shape_cast %84 : vector<2x64xf32> to vector<1x2x64xf32>
    tpu.vector_store %arg20[%c3, %c0_25, %c0_26], %87 {strides = array<i32>} : memref<8x2x64xf32, #tpu.memory_space<vmem>>, vector<1x2x64xf32>,
    %88 = vector.extract_strided_slice %27 {offsets = [4, 0, 0], sizes = [1, 2, 64], strides = [1, 1, 1]} : vector<8x2x64xf32> to vector<1x2x64xf32>
    %89 = vector.shape_cast %88 : vector<1x2x64xf32> to vector<2x64xf32>
    %90 = arith.mulf %89, %81 : vector<2x64xf32>
    %91 = vector.extract_strided_slice %39 {offsets = [4, 0, 0], sizes = [1, 2, 64], strides = [1, 1, 1]} : vector<8x2x64xf32> to vector<1x2x64xf32>
    %92 = vector.shape_cast %91 : vector<1x2x64xf32> to vector<2x64xf32>
    %93 = arith.addf %90, %92 : vector<2x64xf32>
    %94 = vector.extract_strided_slice %34 {offsets = [4, 0, 0], sizes = [1, 2, 64], strides = [1, 1, 1]} : vector<8x2x64xf32> to vector<1x2x64xf32>
    %95 = vector.shape_cast %94 : vector<1x2x64xf32> to vector<2x64xf32>
    %96 = arith.mulf %95, %93 : vector<2x64xf32>
    %c4 = arith.constant 4 : index
    %c0_27 = arith.constant 0 : index
    %c0_28 = arith.constant 0 : index
    %97 = vector.load %arg20[%c4, %c0_27, %c0_28] : memref<8x2x64xf32, #tpu.memory_space<vmem>>, vector<1x2x64xf32>
    %98 = vector.shape_cast %97 : vector<1x2x64xf32> to vector<2x64xf32>
    %99 = vector.shape_cast %96 : vector<2x64xf32> to vector<1x2x64xf32>
    tpu.vector_store %arg20[%c4, %c0_27, %c0_28], %99 {strides = array<i32>} : memref<8x2x64xf32, #tpu.memory_space<vmem>>, vector<1x2x64xf32>,
    %100 = vector.extract_strided_slice %27 {offsets = [5, 0, 0], sizes = [1, 2, 64], strides = [1, 1, 1]} : vector<8x2x64xf32> to vector<1x2x64xf32>
    %101 = vector.shape_cast %100 : vector<1x2x64xf32> to vector<2x64xf32>
    %102 = arith.mulf %101, %93 : vector<2x64xf32>
    %103 = vector.extract_strided_slice %39 {offsets = [5, 0, 0], sizes = [1, 2, 64], strides = [1, 1, 1]} : vector<8x2x64xf32> to vector<1x2x64xf32>
    %104 = vector.shape_cast %103 : vector<1x2x64xf32> to vector<2x64xf32>
    %105 = arith.addf %102, %104 : vector<2x64xf32>
    %106 = vector.extract_strided_slice %34 {offsets = [5, 0, 0], sizes = [1, 2, 64], strides = [1, 1, 1]} : vector<8x2x64xf32> to vector<1x2x64xf32>
    %107 = vector.shape_cast %106 : vector<1x2x64xf32> to vector<2x64xf32>
    %108 = arith.mulf %107, %105 : vector<2x64xf32>
    %c5 = arith.constant 5 : index
    %c0_29 = arith.constant 0 : index
    %c0_30 = arith.constant 0 : index
    %109 = vector.load %arg20[%c5, %c0_29, %c0_30] : memref<8x2x64xf32, #tpu.memory_space<vmem>>, vector<1x2x64xf32>
    %110 = vector.shape_cast %109 : vector<1x2x64xf32> to vector<2x64xf32>
    %111 = vector.shape_cast %108 : vector<2x64xf32> to vector<1x2x64xf32>
    tpu.vector_store %arg20[%c5, %c0_29, %c0_30], %111 {strides = array<i32>} : memref<8x2x64xf32, #tpu.memory_space<vmem>>, vector<1x2x64xf32>,
    %112 = vector.extract_strided_slice %27 {offsets = [6, 0, 0], sizes = [1, 2, 64], strides = [1, 1, 1]} : vector<8x2x64xf32> to vector<1x2x64xf32>
    %113 = vector.shape_cast %112 : vector<1x2x64xf32> to vector<2x64xf32>
    %114 = arith.mulf %113, %105 : vector<2x64xf32>
    %115 = vector.extract_strided_slice %39 {offsets = [6, 0, 0], sizes = [1, 2, 64], strides = [1, 1, 1]} : vector<8x2x64xf32> to vector<1x2x64xf32>
    %116 = vector.shape_cast %115 : vector<1x2x64xf32> to vector<2x64xf32>
    %117 = arith.addf %114, %116 : vector<2x64xf32>
    %118 = vector.extract_strided_slice %34 {offsets = [6, 0, 0], sizes = [1, 2, 64], strides = [1, 1, 1]} : vector<8x2x64xf32> to vector<1x2x64xf32>
    %119 = vector.shape_cast %118 : vector<1x2x64xf32> to vector<2x64xf32>
    %120 = arith.mulf %119, %117 : vector<2x64xf32>
    %c6 = arith.constant 6 : index
    %c0_31 = arith.constant 0 : index
    %c0_32 = arith.constant 0 : index
    %121 = vector.load %arg20[%c6, %c0_31, %c0_32] : memref<8x2x64xf32, #tpu.memory_space<vmem>>, vector<1x2x64xf32>
    %122 = vector.shape_cast %121 : vector<1x2x64xf32> to vector<2x64xf32>
    %123 = vector.shape_cast %120 : vector<2x64xf32> to vector<1x2x64xf32>
    tpu.vector_store %arg20[%c6, %c0_31, %c0_32], %123 {strides = array<i32>} : memref<8x2x64xf32, #tpu.memory_space<vmem>>, vector<1x2x64xf32>,
    %124 = vector.extract_strided_slice %27 {offsets = [7, 0, 0], sizes = [1, 2, 64], strides = [1, 1, 1]} : vector<8x2x64xf32> to vector<1x2x64xf32>
    %125 = vector.shape_cast %124 : vector<1x2x64xf32> to vector<2x64xf32>
    %126 = arith.mulf %125, %117 : vector<2x64xf32>
    %127 = vector.extract_strided_slice %39 {offsets = [7, 0, 0], sizes = [1, 2, 64], strides = [1, 1, 1]} : vector<8x2x64xf32> to vector<1x2x64xf32>
    %128 = vector.shape_cast %127 : vector<1x2x64xf32> to vector<2x64xf32>
    %129 = arith.addf %126, %128 : vector<2x64xf32>
    %130 = vector.extract_strided_slice %34 {offsets = [7, 0, 0], sizes = [1, 2, 64], strides = [1, 1, 1]} : vector<8x2x64xf32> to vector<1x2x64xf32>
    %131 = vector.shape_cast %130 : vector<1x2x64xf32> to vector<2x64xf32>
    %132 = arith.mulf %131, %129 : vector<2x64xf32>
    %c7 = arith.constant 7 : index
    %c0_33 = arith.constant 0 : index
    %c0_34 = arith.constant 0 : index
    %133 = vector.load %arg20[%c7, %c0_33, %c0_34] : memref<8x2x64xf32, #tpu.memory_space<vmem>>, vector<1x2x64xf32>
    %134 = vector.shape_cast %133 : vector<1x2x64xf32> to vector<2x64xf32>
    %135 = vector.shape_cast %132 : vector<2x64xf32> to vector<1x2x64xf32>
    tpu.vector_store %arg20[%c7, %c0_33, %c0_34], %135 {strides = array<i32>} : memref<8x2x64xf32, #tpu.memory_space<vmem>>, vector<1x2x64xf32>,
    %c0_35 = arith.constant 0 : index
    %c0_36 = arith.constant 0 : index
    %c0_37 = arith.constant 0 : index
    %136 = vector.load %arg20[%c0_35, %c0_36, %c0_37] : memref<8x2x64xf32, #tpu.memory_space<vmem>>, vector<8x2x64xf32>
    %137 = vector.shape_cast %136 : vector<8x2x64xf32> to vector<16x64xf32>
    %c0_38 = arith.constant 0 : index
    %c0_39 = arith.constant 0 : index
    %138 = vector.load %arg6[%c0_38, %c0_39] : memref<16x64xf32, #tpu.memory_space<vmem>>, vector<16x64xf32>
    %139 = arith.mulf %137, %138 : vector<16x64xf32>
    %140 = arith.truncf %139 : vector<16x64xf32> to vector<16x64xbf16>
    %c0_40 = arith.constant 0 : index
    %c0_41 = arith.constant 0 : index
    %141 = vector.load %arg10[%c0_40, %c0_41] : memref<64x192xbf16, #tpu.memory_space<vmem>>, vector<64x192xbf16>
    %cst_42 = arith.constant dense<0.000000e+00> : vector<16x192xf32>
    %142 = tpu.matmul %140, %141, %cst_42 {dimension_numbers = #tpu.dot_dimension_numbers<[1], [0], [0], [1], [0, 0, 1, 1], [], []>} : vector<16x64xbf16>, vector<64x192xbf16>, vector<16x192xf32> -> vector<16x192xf32>
    %c0_43 = arith.constant 0 : index
    %c0_44 = arith.constant 0 : index
    %143 = vector.load %arg11[%c0_43, %c0_44] : memref<1x192xf32, #tpu.memory_space<vmem>>, vector<1x192xf32>
    %144 = vector.broadcast %143 : vector<1x192xf32> to vector<16x192xf32>
    %145 = arith.addf %142, %144 : vector<16x192xf32>
    %146 = vector.extract_strided_slice %145 {offsets = [0, 0], sizes = [16, 64], strides = [1, 1]} : vector<16x192xf32> to vector<16x64xf32>
    %147 = math.tanh %146 : vector<16x64xf32>
    %148 = vector.shape_cast %147 : vector<16x64xf32> to vector<8x2x64xf32>
    %149 = vector.extract_strided_slice %145 {offsets = [0, 64], sizes = [16, 64], strides = [1, 1]} : vector<16x192xf32> to vector<16x64xf32>
    %150 = arith.negf %149 : vector<16x64xf32>
    %151 = math.exp %150 : vector<16x64xf32>
    %cst_45 = arith.constant 1.000000e+00 : f32
    %152 = vector.broadcast %cst_45 : f32 to vector<16x64xf32>
    %153 = arith.addf %152, %151 : vector<16x64xf32>
    %154 = arith.divf %152, %153 : vector<16x64xf32>
    %155 = vector.shape_cast %154 : vector<16x64xf32> to vector<8x2x64xf32>
    %156 = vector.extract_strided_slice %145 {offsets = [0, 128], sizes = [16, 64], strides = [1, 1]} : vector<16x192xf32> to vector<16x64xf32>
    %157 = arith.negf %156 : vector<16x64xf32>
    %158 = math.exp %157 : vector<16x64xf32>
    %cst_46 = arith.constant 1.000000e+00 : f32
    %159 = vector.broadcast %cst_46 : f32 to vector<16x64xf32>
    %160 = arith.addf %159, %158 : vector<16x64xf32>
    %161 = arith.divf %159, %160 : vector<16x64xf32>
    %162 = vector.shape_cast %161 : vector<16x64xf32> to vector<8x2x64xf32>
    %c1_47 = arith.constant 1 : index
    %c0_48 = arith.constant 0 : index
    %c0_49 = arith.constant 0 : index
    %163 = vector.load %arg2[%c1_47, %c0_48, %c0_49] : memref<2x2x64xf32, #tpu.memory_space<vmem>>, vector<1x2x64xf32>
    %164 = vector.shape_cast %163 : vector<1x2x64xf32> to vector<2x64xf32>
    %cst_50 = arith.constant 1.000000e+00 : f32
    %165 = vector.broadcast %cst_50 : f32 to vector<8x2x64xf32>
    %166 = arith.subf %165, %155 : vector<8x2x64xf32>
    %167 = arith.mulf %166, %148 : vector<8x2x64xf32>
    %168 = vector.extract_strided_slice %155 {offsets = [0, 0, 0], sizes = [1, 2, 64], strides = [1, 1, 1]} : vector<8x2x64xf32> to vector<1x2x64xf32>
    %169 = vector.shape_cast %168 : vector<1x2x64xf32> to vector<2x64xf32>
    %170 = arith.mulf %169, %164 : vector<2x64xf32>
    %171 = vector.extract_strided_slice %167 {offsets = [0, 0, 0], sizes = [1, 2, 64], strides = [1, 1, 1]} : vector<8x2x64xf32> to vector<1x2x64xf32>
    %172 = vector.shape_cast %171 : vector<1x2x64xf32> to vector<2x64xf32>
    %173 = arith.addf %170, %172 : vector<2x64xf32>
    %174 = vector.extract_strided_slice %162 {offsets = [0, 0, 0], sizes = [1, 2, 64], strides = [1, 1, 1]} : vector<8x2x64xf32> to vector<1x2x64xf32>
    %175 = vector.shape_cast %174 : vector<1x2x64xf32> to vector<2x64xf32>
    %176 = arith.mulf %175, %173 : vector<2x64xf32>
    %c0_51 = arith.constant 0 : index
    %c0_52 = arith.constant 0 : index
    %c0_53 = arith.constant 0 : index
    %177 = vector.load %arg20[%c0_51, %c0_52, %c0_53] : memref<8x2x64xf32, #tpu.memory_space<vmem>>, vector<1x2x64xf32>
    %178 = vector.shape_cast %177 : vector<1x2x64xf32> to vector<2x64xf32>
    %179 = vector.shape_cast %176 : vector<2x64xf32> to vector<1x2x64xf32>
    tpu.vector_store %arg20[%c0_51, %c0_52, %c0_53], %179 {strides = array<i32>} : memref<8x2x64xf32, #tpu.memory_space<vmem>>, vector<1x2x64xf32>,
    %180 = vector.extract_strided_slice %155 {offsets = [1, 0, 0], sizes = [1, 2, 64], strides = [1, 1, 1]} : vector<8x2x64xf32> to vector<1x2x64xf32>
    %181 = vector.shape_cast %180 : vector<1x2x64xf32> to vector<2x64xf32>
    %182 = arith.mulf %181, %173 : vector<2x64xf32>
    %183 = vector.extract_strided_slice %167 {offsets = [1, 0, 0], sizes = [1, 2, 64], strides = [1, 1, 1]} : vector<8x2x64xf32> to vector<1x2x64xf32>
    %184 = vector.shape_cast %183 : vector<1x2x64xf32> to vector<2x64xf32>
    %185 = arith.addf %182, %184 : vector<2x64xf32>
    %186 = vector.extract_strided_slice %162 {offsets = [1, 0, 0], sizes = [1, 2, 64], strides = [1, 1, 1]} : vector<8x2x64xf32> to vector<1x2x64xf32>
    %187 = vector.shape_cast %186 : vector<1x2x64xf32> to vector<2x64xf32>
    %188 = arith.mulf %187, %185 : vector<2x64xf32>
    %c1_54 = arith.constant 1 : index
    %c0_55 = arith.constant 0 : index
    %c0_56 = arith.constant 0 : index
    %189 = vector.load %arg20[%c1_54, %c0_55, %c0_56] : memref<8x2x64xf32, #tpu.memory_space<vmem>>, vector<1x2x64xf32>
    %190 = vector.shape_cast %189 : vector<1x2x64xf32> to vector<2x64xf32>
    %191 = vector.shape_cast %188 : vector<2x64xf32> to vector<1x2x64xf32>
    tpu.vector_store %arg20[%c1_54, %c0_55, %c0_56], %191 {strides = array<i32>} : memref<8x2x64xf32, #tpu.memory_space<vmem>>, vector<1x2x64xf32>,
    %192 = vector.extract_strided_slice %155 {offsets = [2, 0, 0], sizes = [1, 2, 64], strides = [1, 1, 1]} : vector<8x2x64xf32> to vector<1x2x64xf32>
    %193 = vector.shape_cast %192 : vector<1x2x64xf32> to vector<2x64xf32>
    %194 = arith.mulf %193, %185 : vector<2x64xf32>
    %195 = vector.extract_strided_slice %167 {offsets = [2, 0, 0], sizes = [1, 2, 64], strides = [1, 1, 1]} : vector<8x2x64xf32> to vector<1x2x64xf32>
    %196 = vector.shape_cast %195 : vector<1x2x64xf32> to vector<2x64xf32>
    %197 = arith.addf %194, %196 : vector<2x64xf32>
    %198 = vector.extract_strided_slice %162 {offsets = [2, 0, 0], sizes = [1, 2, 64], strides = [1, 1, 1]} : vector<8x2x64xf32> to vector<1x2x64xf32>
    %199 = vector.shape_cast %198 : vector<1x2x64xf32> to vector<2x64xf32>
    %200 = arith.mulf %199, %197 : vector<2x64xf32>
    %c2_57 = arith.constant 2 : index
    %c0_58 = arith.constant 0 : index
    %c0_59 = arith.constant 0 : index
    %201 = vector.load %arg20[%c2_57, %c0_58, %c0_59] : memref<8x2x64xf32, #tpu.memory_space<vmem>>, vector<1x2x64xf32>
    %202 = vector.shape_cast %201 : vector<1x2x64xf32> to vector<2x64xf32>
    %203 = vector.shape_cast %200 : vector<2x64xf32> to vector<1x2x64xf32>
    tpu.vector_store %arg20[%c2_57, %c0_58, %c0_59], %203 {strides = array<i32>} : memref<8x2x64xf32, #tpu.memory_space<vmem>>, vector<1x2x64xf32>,
    %204 = vector.extract_strided_slice %155 {offsets = [3, 0, 0], sizes = [1, 2, 64], strides = [1, 1, 1]} : vector<8x2x64xf32> to vector<1x2x64xf32>
    %205 = vector.shape_cast %204 : vector<1x2x64xf32> to vector<2x64xf32>
    %206 = arith.mulf %205, %197 : vector<2x64xf32>
    %207 = vector.extract_strided_slice %167 {offsets = [3, 0, 0], sizes = [1, 2, 64], strides = [1, 1, 1]} : vector<8x2x64xf32> to vector<1x2x64xf32>
    %208 = vector.shape_cast %207 : vector<1x2x64xf32> to vector<2x64xf32>
    %209 = arith.addf %206, %208 : vector<2x64xf32>
    %210 = vector.extract_strided_slice %162 {offsets = [3, 0, 0], sizes = [1, 2, 64], strides = [1, 1, 1]} : vector<8x2x64xf32> to vector<1x2x64xf32>
    %211 = vector.shape_cast %210 : vector<1x2x64xf32> to vector<2x64xf32>
    %212 = arith.mulf %211, %209 : vector<2x64xf32>
    %c3_60 = arith.constant 3 : index
    %c0_61 = arith.constant 0 : index
    %c0_62 = arith.constant 0 : index
    %213 = vector.load %arg20[%c3_60, %c0_61, %c0_62] : memref<8x2x64xf32, #tpu.memory_space<vmem>>, vector<1x2x64xf32>
    %214 = vector.shape_cast %213 : vector<1x2x64xf32> to vector<2x64xf32>
    %215 = vector.shape_cast %212 : vector<2x64xf32> to vector<1x2x64xf32>
    tpu.vector_store %arg20[%c3_60, %c0_61, %c0_62], %215 {strides = array<i32>} : memref<8x2x64xf32, #tpu.memory_space<vmem>>, vector<1x2x64xf32>,
    %216 = vector.extract_strided_slice %155 {offsets = [4, 0, 0], sizes = [1, 2, 64], strides = [1, 1, 1]} : vector<8x2x64xf32> to vector<1x2x64xf32>
    %217 = vector.shape_cast %216 : vector<1x2x64xf32> to vector<2x64xf32>
    %218 = arith.mulf %217, %209 : vector<2x64xf32>
    %219 = vector.extract_strided_slice %167 {offsets = [4, 0, 0], sizes = [1, 2, 64], strides = [1, 1, 1]} : vector<8x2x64xf32> to vector<1x2x64xf32>
    %220 = vector.shape_cast %219 : vector<1x2x64xf32> to vector<2x64xf32>
    %221 = arith.addf %218, %220 : vector<2x64xf32>
    %222 = vector.extract_strided_slice %162 {offsets = [4, 0, 0], sizes = [1, 2, 64], strides = [1, 1, 1]} : vector<8x2x64xf32> to vector<1x2x64xf32>
    %223 = vector.shape_cast %222 : vector<1x2x64xf32> to vector<2x64xf32>
    %224 = arith.mulf %223, %221 : vector<2x64xf32>
    %c4_63 = arith.constant 4 : index
    %c0_64 = arith.constant 0 : index
    %c0_65 = arith.constant 0 : index
    %225 = vector.load %arg20[%c4_63, %c0_64, %c0_65] : memref<8x2x64xf32, #tpu.memory_space<vmem>>, vector<1x2x64xf32>
    %226 = vector.shape_cast %225 : vector<1x2x64xf32> to vector<2x64xf32>
    %227 = vector.shape_cast %224 : vector<2x64xf32> to vector<1x2x64xf32>
    tpu.vector_store %arg20[%c4_63, %c0_64, %c0_65], %227 {strides = array<i32>} : memref<8x2x64xf32, #tpu.memory_space<vmem>>, vector<1x2x64xf32>,
    %228 = vector.extract_strided_slice %155 {offsets = [5, 0, 0], sizes = [1, 2, 64], strides = [1, 1, 1]} : vector<8x2x64xf32> to vector<1x2x64xf32>
    %229 = vector.shape_cast %228 : vector<1x2x64xf32> to vector<2x64xf32>
    %230 = arith.mulf %229, %221 : vector<2x64xf32>
    %231 = vector.extract_strided_slice %167 {offsets = [5, 0, 0], sizes = [1, 2, 64], strides = [1, 1, 1]} : vector<8x2x64xf32> to vector<1x2x64xf32>
    %232 = vector.shape_cast %231 : vector<1x2x64xf32> to vector<2x64xf32>
    %233 = arith.addf %230, %232 : vector<2x64xf32>
    %234 = vector.extract_strided_slice %162 {offsets = [5, 0, 0], sizes = [1, 2, 64], strides = [1, 1, 1]} : vector<8x2x64xf32> to vector<1x2x64xf32>
    %235 = vector.shape_cast %234 : vector<1x2x64xf32> to vector<2x64xf32>
    %236 = arith.mulf %235, %233 : vector<2x64xf32>
    %c5_66 = arith.constant 5 : index
    %c0_67 = arith.constant 0 : index
    %c0_68 = arith.constant 0 : index
    %237 = vector.load %arg20[%c5_66, %c0_67, %c0_68] : memref<8x2x64xf32, #tpu.memory_space<vmem>>, vector<1x2x64xf32>
    %238 = vector.shape_cast %237 : vector<1x2x64xf32> to vector<2x64xf32>
    %239 = vector.shape_cast %236 : vector<2x64xf32> to vector<1x2x64xf32>
    tpu.vector_store %arg20[%c5_66, %c0_67, %c0_68], %239 {strides = array<i32>} : memref<8x2x64xf32, #tpu.memory_space<vmem>>, vector<1x2x64xf32>,
    %240 = vector.extract_strided_slice %155 {offsets = [6, 0, 0], sizes = [1, 2, 64], strides = [1, 1, 1]} : vector<8x2x64xf32> to vector<1x2x64xf32>
    %241 = vector.shape_cast %240 : vector<1x2x64xf32> to vector<2x64xf32>
    %242 = arith.mulf %241, %233 : vector<2x64xf32>
    %243 = vector.extract_strided_slice %167 {offsets = [6, 0, 0], sizes = [1, 2, 64], strides = [1, 1, 1]} : vector<8x2x64xf32> to vector<1x2x64xf32>
    %244 = vector.shape_cast %243 : vector<1x2x64xf32> to vector<2x64xf32>
    %245 = arith.addf %242, %244 : vector<2x64xf32>
    %246 = vector.extract_strided_slice %162 {offsets = [6, 0, 0], sizes = [1, 2, 64], strides = [1, 1, 1]} : vector<8x2x64xf32> to vector<1x2x64xf32>
    %247 = vector.shape_cast %246 : vector<1x2x64xf32> to vector<2x64xf32>
    %248 = arith.mulf %247, %245 : vector<2x64xf32>
    %c6_69 = arith.constant 6 : index
    %c0_70 = arith.constant 0 : index
    %c0_71 = arith.constant 0 : index
    %249 = vector.load %arg20[%c6_69, %c0_70, %c0_71] : memref<8x2x64xf32, #tpu.memory_space<vmem>>, vector<1x2x64xf32>
    %250 = vector.shape_cast %249 : vector<1x2x64xf32> to vector<2x64xf32>
    %251 = vector.shape_cast %248 : vector<2x64xf32> to vector<1x2x64xf32>
    tpu.vector_store %arg20[%c6_69, %c0_70, %c0_71], %251 {strides = array<i32>} : memref<8x2x64xf32, #tpu.memory_space<vmem>>, vector<1x2x64xf32>,
    %252 = vector.extract_strided_slice %155 {offsets = [7, 0, 0], sizes = [1, 2, 64], strides = [1, 1, 1]} : vector<8x2x64xf32> to vector<1x2x64xf32>
    %253 = vector.shape_cast %252 : vector<1x2x64xf32> to vector<2x64xf32>
    %254 = arith.mulf %253, %245 : vector<2x64xf32>
    %255 = vector.extract_strided_slice %167 {offsets = [7, 0, 0], sizes = [1, 2, 64], strides = [1, 1, 1]} : vector<8x2x64xf32> to vector<1x2x64xf32>
    %256 = vector.shape_cast %255 : vector<1x2x64xf32> to vector<2x64xf32>
    %257 = arith.addf %254, %256 : vector<2x64xf32>
    %258 = vector.extract_strided_slice %162 {offsets = [7, 0, 0], sizes = [1, 2, 64], strides = [1, 1, 1]} : vector<8x2x64xf32> to vector<1x2x64xf32>
    %259 = vector.shape_cast %258 : vector<1x2x64xf32> to vector<2x64xf32>
    %260 = arith.mulf %259, %257 : vector<2x64xf32>
    %c7_72 = arith.constant 7 : index
    %c0_73 = arith.constant 0 : index
    %c0_74 = arith.constant 0 : index
    %261 = vector.load %arg20[%c7_72, %c0_73, %c0_74] : memref<8x2x64xf32, #tpu.memory_space<vmem>>, vector<1x2x64xf32>
    %262 = vector.shape_cast %261 : vector<1x2x64xf32> to vector<2x64xf32>
    %263 = vector.shape_cast %260 : vector<2x64xf32> to vector<1x2x64xf32>
    tpu.vector_store %arg20[%c7_72, %c0_73, %c0_74], %263 {strides = array<i32>} : memref<8x2x64xf32, #tpu.memory_space<vmem>>, vector<1x2x64xf32>,
    %c0_75 = arith.constant 0 : index
    %c0_76 = arith.constant 0 : index
    %c0_77 = arith.constant 0 : index
    %264 = vector.load %arg20[%c0_75, %c0_76, %c0_77] : memref<8x2x64xf32, #tpu.memory_space<vmem>>, vector<8x2x64xf32>
    %265 = vector.shape_cast %264 : vector<8x2x64xf32> to vector<16x64xf32>
    %c0_78 = arith.constant 0 : index
    %c0_79 = arith.constant 0 : index
    %266 = vector.load %arg7[%c0_78, %c0_79] : memref<16x64xf32, #tpu.memory_space<vmem>>, vector<16x64xf32>
    %267 = arith.mulf %265, %266 : vector<16x64xf32>
    %c0_80 = arith.constant 0 : index
    %c0_81 = arith.constant 0 : index
    %c0_82 = arith.constant 0 : index
    %268 = vector.load %arg18[%c0_80, %c0_81, %c0_82] : memref<2x2x64xf32, #tpu.memory_space<vmem>>, vector<1x2x64xf32>
    %269 = vector.shape_cast %268 : vector<1x2x64xf32> to vector<2x64xf32>
    %270 = vector.shape_cast %129 : vector<2x64xf32> to vector<1x2x64xf32>
    tpu.vector_store %arg18[%c0_80, %c0_81, %c0_82], %270 {strides = array<i32>} : memref<2x2x64xf32, #tpu.memory_space<vmem>>, vector<1x2x64xf32>,
    %c1_83 = arith.constant 1 : index
    %c0_84 = arith.constant 0 : index
    %c0_85 = arith.constant 0 : index
    %271 = vector.load %arg18[%c1_83, %c0_84, %c0_85] : memref<2x2x64xf32, #tpu.memory_space<vmem>>, vector<1x2x64xf32>
    %272 = vector.shape_cast %271 : vector<1x2x64xf32> to vector<2x64xf32>
    %273 = vector.shape_cast %257 : vector<2x64xf32> to vector<1x2x64xf32>
    tpu.vector_store %arg18[%c1_83, %c0_84, %c0_85], %273 {strides = array<i32>} : memref<2x2x64xf32, #tpu.memory_space<vmem>>, vector<1x2x64xf32>,
    %274 = vector.shape_cast %267 : vector<16x64xf32> to vector<8x2x64xf32>
    %275 = tpu.transpose %274, [1, 0, 2] : vector<8x2x64xf32> -> vector<2x8x64xf32>
    %c0_86 = arith.constant 0 : index
    %c0_87 = arith.constant 0 : index
    %c0_88 = arith.constant 0 : index
    %276 = vector.load %arg3[%c0_86, %c0_87, %c0_88] : memref<2x128x64xbf16, #tpu.memory_space<vmem>>, vector<2x128x64xbf16>
    %277 = arith.truncf %275 : vector<2x8x64xf32> to vector<2x8x64xbf16>
    "tpu.trace_start"() <{level = 10 : i32, message = "bth,bsh->bts"}> : () -> ()
    %cst_89 = arith.constant dense<0.000000e+00> : vector<2x8x128xf32>
    %278 = tpu.matmul %277, %276, %cst_89 {dimension_numbers = #tpu.dot_dimension_numbers<[2], [2], [1], [1], [0, 0, 0, 1, 1, 1], [0], [0]>} : vector<2x8x64xbf16>, vector<2x128x64xbf16>, vector<2x8x128xf32> -> vector<2x8x128xf32>
    "tpu.trace_stop"() : () -> ()
    %c0_90 = arith.constant 0 : index
    %c0_91 = arith.constant 0 : index
    %279 = vector.load %arg4[%c0_90, %c0_91] : memref<2x128xf32, #tpu.memory_space<vmem>>, vector<2x128xf32>
    %280 = vector.shape_cast %279 : vector<2x128xf32> to vector<2x1x128xf32>
    %cst_92 = arith.constant 0.000000e+00 : f32
    %281 = vector.broadcast %cst_92 : f32 to vector<2x1x128xf32>
    %282 = arith.cmpf ogt, %280, %281 : vector<2x1x128xf32>
    %cst_93 = arith.constant -1.000000e+09 : f32
    %283 = vector.shape_cast %282 : vector<2x1x128xi1> to vector<2x1x128xi1>
    %284 = vector.broadcast %283 : vector<2x1x128xi1> to vector<2x8x128xi1>
    %285 = vector.broadcast %cst_93 : f32 to vector<2x8x128xf32>
    %286 = arith.select %284, %278, %285 : vector<2x8x128xi1>, vector<2x8x128xf32>
    %cst_94 = arith.constant dense<0xFF800000> : vector<2x8xf32>
    %287 = vector.multi_reduction <maximumf>, %286, %cst_94 [2] : vector<2x8x128xf32> to vector<2x8xf32>
    %288 = vector.shape_cast %287 : vector<2x8xf32> to vector<2x8x1xf32>
    %289 = vector.broadcast %288 : vector<2x8x1xf32> to vector<2x8x128xf32>
    %290 = arith.subf %286, %289 : vector<2x8x128xf32>
    %291 = math.exp %290 : vector<2x8x128xf32>
    %cst_95 = arith.constant dense<0.000000e+00> : vector<2x8xf32>
    %292 = vector.multi_reduction <add>, %291, %cst_95 [2] : vector<2x8x128xf32> to vector<2x8xf32>
    %293 = vector.shape_cast %292 : vector<2x8xf32> to vector<2x8x1xf32>
    %cst_96 = arith.constant 1.000000e+00 : f32
    %294 = vector.broadcast %cst_96 : f32 to vector<2x8x1xf32>
    %295 = arith.divf %294, %293 : vector<2x8x1xf32>
    %296 = vector.broadcast %295 : vector<2x8x1xf32> to vector<2x8x128xf32>
    %297 = arith.mulf %291, %296 : vector<2x8x128xf32>
    %298 = vector.shape_cast %297 : vector<2x8x128xf32> to vector<16x128xf32>
    %c0_97 = arith.constant 0 : index
    %c0_98 = arith.constant 0 : index
    %299 = vector.load %arg19[%c0_97, %c0_98] : memref<16x128xf32, #tpu.memory_space<vmem>>, vector<16x128xf32>
    tpu.vector_store %arg19[%c0_97, %c0_98], %298 {strides = array<i32>} : memref<16x128xf32, #tpu.memory_space<vmem>>, vector<16x128xf32>,
    %300 = arith.truncf %297 : vector<2x8x128xf32> to vector<2x8x128xbf16>
    "tpu.trace_start"() <{level = 10 : i32, message = "bts,bsh->bth"}> : () -> ()
    %cst_99 = arith.constant dense<0.000000e+00> : vector<2x8x64xf32>
    %301 = tpu.matmul %300, %276, %cst_99 {dimension_numbers = #tpu.dot_dimension_numbers<[2], [1], [1], [2], [0, 0, 0, 1, 1, 2], [0], [0]>} : vector<2x8x128xbf16>, vector<2x128x64xbf16>, vector<2x8x64xf32> -> vector<2x8x64xf32>
    "tpu.trace_stop"() : () -> ()
    %302 = vector.shape_cast %301 : vector<2x8x64xf32> to vector<16x64xf32>
    %303 = vector.shape_cast %275 : vector<2x8x64xf32> to vector<16x64xf32>
    %304 = arith.truncf %302 : vector<16x64xf32> to vector<16x64xbf16>
    %c0_100 = arith.constant 0 : index
    %c0_101 = arith.constant 0 : index
    %305 = vector.load %arg12[%c0_100, %c0_101] : memref<64x64xbf16, #tpu.memory_space<vmem>>, vector<64x64xbf16>
    %cst_102 = arith.constant dense<0.000000e+00> : vector<16x64xf32>
    %306 = tpu.matmul %304, %305, %cst_102 {dimension_numbers = #tpu.dot_dimension_numbers<[1], [0], [0], [1], [0, 0, 1, 1], [], []>} : vector<16x64xbf16>, vector<64x64xbf16>, vector<16x64xf32> -> vector<16x64xf32>
    %307 = arith.truncf %303 : vector<16x64xf32> to vector<16x64xbf16>
    %c0_103 = arith.constant 0 : index
    %c0_104 = arith.constant 0 : index
    %308 = vector.load %arg13[%c0_103, %c0_104] : memref<64x64xbf16, #tpu.memory_space<vmem>>, vector<64x64xbf16>
    %cst_105 = arith.constant dense<0.000000e+00> : vector<16x64xf32>
    %309 = tpu.matmul %307, %308, %cst_105 {dimension_numbers = #tpu.dot_dimension_numbers<[1], [0], [0], [1], [0, 0, 1, 1], [], []>} : vector<16x64xbf16>, vector<64x64xbf16>, vector<16x64xf32> -> vector<16x64xf32>
    %310 = arith.addf %306, %309 : vector<16x64xf32>
    %c0_106 = arith.constant 0 : index
    %c0_107 = arith.constant 0 : index
    %311 = vector.load %arg14[%c0_106, %c0_107] : memref<1x64xf32, #tpu.memory_space<vmem>>, vector<1x64xf32>
    %312 = vector.broadcast %311 : vector<1x64xf32> to vector<16x64xf32>
    %313 = arith.addf %310, %312 : vector<16x64xf32>
    %314 = math.tanh %313 : vector<16x64xf32>
    %315 = arith.truncf %314 : vector<16x64xf32> to vector<16x64xbf16>
    %c0_108 = arith.constant 0 : index
    %c0_109 = arith.constant 0 : index
    %316 = vector.load %arg15[%c0_108, %c0_109] : memref<64x128xbf16, #tpu.memory_space<vmem>>, vector<64x128xbf16>
    %cst_110 = arith.constant dense<0.000000e+00> : vector<16x128xf32>
    %317 = tpu.matmul %315, %316, %cst_110 {dimension_numbers = #tpu.dot_dimension_numbers<[1], [0], [0], [1], [0, 0, 1, 1], [], []>} : vector<16x64xbf16>, vector<64x128xbf16>, vector<16x128xf32> -> vector<16x128xf32>
    %c0_111 = arith.constant 0 : index
    %c0_112 = arith.constant 0 : index
    %318 = vector.load %arg16[%c0_111, %c0_112] : memref<1x128xf32, #tpu.memory_space<vmem>>, vector<1x128xf32>
    %319 = vector.broadcast %318 : vector<1x128xf32> to vector<16x128xf32>
    %320 = arith.addf %317, %319 : vector<16x128xf32>
    %c0_113 = arith.constant 0 : index
    %c0_114 = arith.constant 0 : index
    %321 = vector.load %arg17[%c0_113, %c0_114] : memref<16x128xf32, #tpu.memory_space<vmem>>, vector<16x128xf32>
    tpu.vector_store %arg17[%c0_113, %c0_114], %320 {strides = array<i32>} : memref<16x128xf32, #tpu.memory_space<vmem>>, vector<16x128xf32>,
    return
  }
}

</mosaic_0001>

<llo_original>
// kernel: tpu_custom_call.1
$region0: #{tpu_custom_call.1}
  #allocation0 [shape = 'u32[]', space=smem, size = 0x4, offset = 0x4, fixed_abs, tag = 'smem constant byte address 0x4 - core index']
  #allocation1 [shape = 'u32[72,128]{1,0:T(1,128)}', space=vmem, size = 0x9000, scoped, tag = 'internal scratch']
  #allocation2 [shape = 'f32[8,2,64]{2,1,0:T(2,128)}', space=vmem, size = 0x2000, scoped, tag = 'scratch operand']
  %s0 = inlined_call_operand.vmem [shape: s32[16,1], index: 0, kind: input, shape index: {}]
  %s1 = inlined_call_operand.vmem [shape: bf16[60,32], index: 1, kind: input, shape index: {}]
  %s2 = inlined_call_operand.hbm [shape: f32[2,2,64], index: 2, kind: input, shape index: {}]
  %s3 = inlined_call_operand.vmem [shape: bf16[2,128,64], index: 3, kind: input, shape index: {}]
  %s4 = inlined_call_operand.vmem [shape: f32[2,128], index: 4, kind: input, shape index: {}]
  %s5 = inlined_call_operand.hbm [shape: f32[16,32], index: 5, kind: input, shape index: {}]
  %s6 = inlined_call_operand.hbm [shape: f32[16,64], index: 6, kind: input, shape index: {}]
  %s7 = inlined_call_operand.hbm [shape: f32[16,64], index: 7, kind: input, shape index: {}]
  %s8 = inlined_call_operand.vmem [shape: bf16[32,192], index: 8, kind: input, shape index: {}]
  %s9 = inlined_call_operand.vmem [shape: f32[1,192], index: 9, kind: input, shape index: {}]
  %s10 = inlined_call_operand.vmem [shape: bf16[64,192], index: 10, kind: input, shape index: {}]
  %s11 = inlined_call_operand.vmem [shape: f32[1,192], index: 11, kind: input, shape index: {}]
  %s12 = inlined_call_operand.vmem [shape: bf16[64,64], index: 12, kind: input, shape index: {}]
  %s13 = inlined_call_operand.vmem [shape: bf16[64,64], index: 13, kind: input, shape index: {}]
  %s14 = inlined_call_operand.vmem [shape: f32[1,64], index: 14, kind: input, shape index: {}]
  %s15 = inlined_call_operand.vmem [shape: bf16[64,128], index: 15, kind: input, shape index: {}]
  %s16 = inlined_call_operand.vmem [shape: f32[1,128], index: 16, kind: input, shape index: {}]
  %s17 = inlined_call_operand.hbm [shape: f32[16,128], index: 17, kind: output, shape index: {0}]
  %s18 = inlined_call_operand.hbm [shape: f32[2,2,64], index: 18, kind: output, shape index: {1}]
  %s19 = inlined_call_operand.hbm [shape: f32[16,128], index: 19, kind: output, shape index: {2}]
  %20 = xla_tuple %s17, %s18, %s19
  %s21 = sld [smem:[#allocation0]]
  $region110: #{tpu_custom_call.1} parent=0
    _
  %s23 = ssub.s32 1, %s21
  %s24 = scalar_select 0, %s23, %s21
  $region1: #{tpu_custom_call.1} parent=0
    #allocation3 [shape = 'u8[2048]{0}', space=vmem, size = 0x800, scoped, tag = 'input window, operand 2, single buffered']
    #allocation4 [shape = 's32[1]{0}', space=sflag, size = 0x4, scoped, tag = 'scoped memory for tpu_custom_call.1']
    #allocation5 [shape = 's32[1]{0}', space=sflag, size = 0x4, scoped, tag = 'scoped memory for tpu_custom_call.1']
    #allocation6 [shape = 'u8[8192]{0}', space=vmem, size = 0x2000, scoped, tag = 'input window, operand 5, single buffered']
    #allocation7 [shape = 's32[1]{0}', space=sflag, size = 0x4, scoped, tag = 'scoped memory for tpu_custom_call.1']
    #allocation8 [shape = 'u8[8192]{0}', space=vmem, size = 0x2000, scoped, tag = 'input window, operand 6, single buffered']
    #allocation9 [shape = 'u8[8192]{0}', space=vmem, size = 0x2000, scoped, tag = 'input window, operand 7, single buffered']
    #allocation10 [shape = 's32[1]{0}', space=sflag, size = 0x4, scoped, tag = 'scoped memory for tpu_custom_call.1']
    #allocation11 [shape = 'u8[8192]{0}', space=vmem, size = 0x2000, scoped, tag = 'output window, operand 0, single buffered']
    #allocation12 [shape = 'u8[2048]{0}', space=vmem, size = 0x800, scoped, tag = 'output window, operand 1, single buffered']
    #allocation13 [shape = 's32[1]{0}', space=sflag, size = 0x4, scoped, tag = 'scoped memory for tpu_custom_call.1']
    #allocation14 [shape = 'u8[8192]{0}', space=vmem, size = 0x2000, scoped, tag = 'output window, operand 2, single buffered']
    %25 = vsyncpa [#allocation4], 0
    %26 = vsyncpa [#allocation7], 0
    %27 = vsyncpa [#allocation10], 0
    %28 = vsyncpa [#allocation5], 0
    %29 = vsyncpa [#allocation13], 0
    // Predicated region
    $region2: #{tpu_custom_call.1} parent=1 // pred_check
      _
    $region3: #{tpu_custom_call.1} parent=1 // pred_check_branch
      %31 = sbr.rel (0) target = $region5
    $region4: #{tpu_custom_call.1} parent=1 // pred_region
      _
    $region5: #{tpu_custom_call.1} parent=1 // pred_fallthru
      _
    // Predicated region
    $region6: #{tpu_custom_call.1} parent=1 // pred_check
      _
    $region7: #{tpu_custom_call.1} parent=1 // pred_check_branch
      %33 = sbr.rel (0) target = $region9
    $region8: #{tpu_custom_call.1} parent=1 // pred_region
      _
    $region9: #{tpu_custom_call.1} parent=1 // pred_fallthru
      _
    // Predicated region
    $region10: #{tpu_custom_call.1} parent=1 // pred_check
      _
    $region11: #{tpu_custom_call.1} parent=1 // pred_check_branch
      %35 = sbr.rel (0) target = $region13
    $region12: #{tpu_custom_call.1} parent=1 // pred_region
      %37 = vsyncadd [#allocation4], 0
      %s38 = sshll.u32 %s2, 4
      %s39 = int_to_ptr.hbm [resolvable:$true] %s38
      %s40 = sshll.u32 [#allocation3], 4
      %s41 = int_to_ptr.vmem [resolvable:$true] %s40
      %46 = dma.hbm_to_vmem [thread:$0]  %s39, 64, %s41, [#allocation4], 32, 32, 2
    $region13: #{tpu_custom_call.1} parent=1 // pred_fallthru
      _
    // Predicated region
    $region14: #{tpu_custom_call.1} parent=1 // pred_check
      _
    $region15: #{tpu_custom_call.1} parent=1 // pred_check_branch
      %48 = sbr.rel (0) target = $region17
    $region16: #{tpu_custom_call.1} parent=1 // pred_region
      _
    $region17: #{tpu_custom_call.1} parent=1 // pred_fallthru
      _
    // Predicated region
    $region18: #{tpu_custom_call.1} parent=1 // pred_check
      _
    $region19: #{tpu_custom_call.1} parent=1 // pred_check_branch
      %50 = sbr.rel (0) target = $region21
    $region20: #{tpu_custom_call.1} parent=1 // pred_region
      _
    $region21: #{tpu_custom_call.1} parent=1 // pred_fallthru
      _
    // Predicated region
    $region22: #{tpu_custom_call.1} parent=1 // pred_check
      _
    $region23: #{tpu_custom_call.1} parent=1 // pred_check_branch
      %52 = sbr.rel (0) target = $region25
    $region24: #{tpu_custom_call.1} parent=1 // pred_region
      %54 = vsyncadd [#allocation7], 0
      %s55 = sshll.u32 %s5, 4
      %s56 = int_to_ptr.hbm [resolvable:$true] %s55
      %s57 = sshll.u32 [#allocation6], 4
      %s58 = int_to_ptr.vmem [resolvable:$true] %s57
      %63 = dma.hbm_to_vmem [thread:$0]  %s56, 256, %s58, [#allocation7], 128, 128, 8
    $region25: #{tpu_custom_call.1} parent=1 // pred_fallthru
      _
    // Predicated region
    $region26: #{tpu_custom_call.1} parent=1 // pred_check
      _
    $region27: #{tpu_custom_call.1} parent=1 // pred_check_branch
      %65 = sbr.rel (0) target = $region29
    $region28: #{tpu_custom_call.1} parent=1 // pred_region
      %67 = vsyncadd [#allocation7], 0
      %s68 = sshll.u32 %s6, 4
      %s69 = int_to_ptr.hbm [resolvable:$true] %s68
      %s70 = sshll.u32 [#allocation8], 4
      %s71 = int_to_ptr.vmem [resolvable:$true] %s70
      %76 = dma.hbm_to_vmem [thread:$0]  %s69, 256, %s71, [#allocation7], 128, 128, 8
    $region29: #{tpu_custom_call.1} parent=1 // pred_fallthru
      _
    // Predicated region
    $region30: #{tpu_custom_call.1} parent=1 // pred_check
      _
    $region31: #{tpu_custom_call.1} parent=1 // pred_check_branch
      %78 = sbr.rel (0) target = $region33
    $region32: #{tpu_custom_call.1} parent=1 // pred_region
      %80 = vsyncadd [#allocation10], 0
      %s81 = sshll.u32 %s7, 4
      %s82 = int_to_ptr.hbm [resolvable:$true] %s81
      %s83 = sshll.u32 [#allocation9], 4
      %s84 = int_to_ptr.vmem [resolvable:$true] %s83
      %89 = dma.hbm_to_vmem [thread:$0]  %s82, 256, %s84, [#allocation10], 128, 128, 8
    $region33: #{tpu_custom_call.1} parent=1 // pred_fallthru
      _
    // Predicated region
    $region34: #{tpu_custom_call.1} parent=1 // pred_check
      _
    $region35: #{tpu_custom_call.1} parent=1 // pred_check_branch
      %91 = sbr.rel (0) target = $region37
    $region36: #{tpu_custom_call.1} parent=1 // pred_region
      _
    $region37: #{tpu_custom_call.1} parent=1 // pred_fallthru
      _
    // Predicated region
    $region38: #{tpu_custom_call.1} parent=1 // pred_check
      _
    $region39: #{tpu_custom_call.1} parent=1 // pred_check_branch
      %93 = sbr.rel (0) target = $region41
    $region40: #{tpu_custom_call.1} parent=1 // pred_region
      _
    $region41: #{tpu_custom_call.1} parent=1 // pred_fallthru
      _
    // Predicated region
    $region42: #{tpu_custom_call.1} parent=1 // pred_check
      _
    $region43: #{tpu_custom_call.1} parent=1 // pred_check_branch
      %95 = sbr.rel (0) target = $region45
    $region44: #{tpu_custom_call.1} parent=1 // pred_region
      _
    $region45: #{tpu_custom_call.1} parent=1 // pred_fallthru
      _
    // Predicated region
    $region46: #{tpu_custom_call.1} parent=1 // pred_check
      _
    $region47: #{tpu_custom_call.1} parent=1 // pred_check_branch
      %97 = sbr.rel (0) target = $region49
    $region48: #{tpu_custom_call.1} parent=1 // pred_region
      _
    $region49: #{tpu_custom_call.1} parent=1 // pred_fallthru
      _
    // Predicated region
    $region50: #{tpu_custom_call.1} parent=1 // pred_check
      _
    $region51: #{tpu_custom_call.1} parent=1 // pred_check_branch
      %99 = sbr.rel (0) target = $region53
    $region52: #{tpu_custom_call.1} parent=1 // pred_region
      _
    $region53: #{tpu_custom_call.1} parent=1 // pred_fallthru
      _
    // Predicated region
    $region54: #{tpu_custom_call.1} parent=1 // pred_check
      _
    $region55: #{tpu_custom_call.1} parent=1 // pred_check_branch
      %101 = sbr.rel (0) target = $region57
    $region56: #{tpu_custom_call.1} parent=1 // pred_region
      _
    $region57: #{tpu_custom_call.1} parent=1 // pred_fallthru
      _
    // Predicated region
    $region58: #{tpu_custom_call.1} parent=1 // pred_check
      _
    $region59: #{tpu_custom_call.1} parent=1 // pred_check_branch
      %103 = sbr.rel (0) target = $region61
    $region60: #{tpu_custom_call.1} parent=1 // pred_region
      _
    $region61: #{tpu_custom_call.1} parent=1 // pred_fallthru
      _
    // Predicated region
    $region62: #{tpu_custom_call.1} parent=1 // pred_check
      _
    $region63: #{tpu_custom_call.1} parent=1 // pred_check_branch
      %105 = sbr.rel (0) target = $region65
    $region64: #{tpu_custom_call.1} parent=1 // pred_region
      _
    $region65: #{tpu_custom_call.1} parent=1 // pred_fallthru
      _
    // Predicated region
    $region66: #{tpu_custom_call.1} parent=1 // pred_check
      _
    $region67: #{tpu_custom_call.1} parent=1 // pred_check_branch
      %107 = sbr.rel (0) target = $region69
    $region68: #{tpu_custom_call.1} parent=1 // pred_region
      _
    $region69: #{tpu_custom_call.1} parent=1 // pred_fallthru
      _
    // Predicated region
    $region70: #{tpu_custom_call.1} parent=1 // pred_check
      _
    $region71: #{tpu_custom_call.1} parent=1 // pred_check_branch
      %109 = sbr.rel (0) target = $region73
    $region72: #{tpu_custom_call.1} parent=1 // pred_region
      %111 = dma.done [#allocation4], 64
    $region73: #{tpu_custom_call.1} parent=1 // pred_fallthru
      _
    // Predicated region
    $region74: #{tpu_custom_call.1} parent=1 // pred_check
      _
    $region75: #{tpu_custom_call.1} parent=1 // pred_check_branch
      %113 = sbr.rel (0) target = $region77
    $region76: #{tpu_custom_call.1} parent=1 // pred_region
      %115 = dma.done [#allocation7], 256
    $region77: #{tpu_custom_call.1} parent=1 // pred_fallthru
      _
    // Predicated region
    $region78: #{tpu_custom_call.1} parent=1 // pred_check
      _
    $region79: #{tpu_custom_call.1} parent=1 // pred_check_branch
      %117 = sbr.rel (0) target = $region81
    $region80: #{tpu_custom_call.1} parent=1 // pred_region
      %119 = dma.done [#allocation7], 256
    $region81: #{tpu_custom_call.1} parent=1 // pred_fallthru
      _
    // Predicated region
    $region82: #{tpu_custom_call.1} parent=1 // pred_check
      _
    $region83: #{tpu_custom_call.1} parent=1 // pred_check_branch
      %121 = sbr.rel (0) target = $region85
    $region84: #{tpu_custom_call.1} parent=1 // pred_region
      %123 = dma.done [#allocation10], 256
    $region85: #{tpu_custom_call.1} parent=1 // pred_fallthru
      _
    %v125 = vld [vmem:[%s0] sm:$0xff]
    %v126 = vld [vmem:[%s0 + $0x8] sm:$0xff]
    %v127 = vlaneseq
    %v128 = vand.u32 %v127, 127
    %129 = vset.pattern.permute.xlu0 0
    %130 = vperm.xlu0 %129, %v125
    %v131 = vpop.permute.xlu0 %130
    %132 = vset.pattern.permute.xlu0 0
    %133 = vperm.xlu0 %132, %v126
    %v134 = vpop.permute.xlu0 %133
    %vm135 = vcmp.eq.s32.totalorder %v131, %v128
    %vm136 = vcmp.eq.s32.totalorder %v134, %v128
    %v137 = vsel %vm135, 1.0, 0.0
    %v138 = vsel %vm136, 1.0, 0.0
    %v139 = vpack.c.bf16 %v138, %v137
    %v140 = vld [vmem:[%s1] sm:$0xf]
    %v141 = vld [vmem:[%s1 + $0x4] sm:$0xf]
    %v142 = vld [vmem:[%s1 + $0x8] sm:$0xf]
    %v143 = vld [vmem:[%s1 + $0xc] sm:$0xf]
    %v144 = vld [vmem:[%s1 + $0x10] sm:$0xf]
    %v145 = vld [vmem:[%s1 + $0x14] sm:$0xf]
    %v146 = vld [vmem:[%s1 + $0x18] sm:$0xf]
    %v147 = vld [vmem:[%s1 + $0x1c] sm:$0x3]
    %v156 = vunpack.c.l.b16 %v140
    %v157 = vunpack.c.l.b16 %v141
    %v158 = vunpack.c.l.b16 %v142
    %v159 = vunpack.c.l.b16 %v143
    %v160 = vunpack.c.l.b16 %v144
    %v161 = vunpack.c.l.b16 %v145
    %v162 = vunpack.c.l.b16 %v146
    %v163 = vunpack.c.l.b16 %v147
    %v164 = vpack.c.b16 %v157, %v156
    %v165 = vpack.c.b16 %v159, %v158
    %v166 = vpack.c.b16 %v161, %v160
    %v167 = vpack.c.b16 %v163, %v162
    %vm171 = vcmask 490496
    %v173 = vsel %vm171, %v139, 0
    %vm175 = vcmask 1045504
    %v177 = vsel %vm175, %v167, 0
    %179 = vmatpush.bf16.msra.mxu0 0
    %180 = vmatpush.bf16.msra.mxu0 0
    %181 = vmatpush.bf16.msra.mxu0 0
    %182 = vmatpush.bf16.msra.mxu0 0
    %183 = vmatpush.bf16.msra.mxu0 %v177
    %184 = vmatpush.bf16.msra.mxu0 %v166
    %185 = vmatpush.bf16.msra.mxu0 %v165
    %186 = vmatpush.bf16.msra.mxu0 %v164
    %187 = vmatmul.bf16.gmra.mxu0 %v173
    %v188 = vpop.f32.mrf.mxu0
    %v189 = vadd.f32 0.0, %v188
    %v190 = vpop.f32.mrf.mxu0
    %v191 = vadd.f32 0.0, %v190
    %192 = vdwg.mxu0
    %v193 = vld [vmem:[#allocation6] sm:$0xff]
    %v194 = vld [vmem:[#allocation6 + $0x8] sm:$0xff]
    %v195 = vmul.f32 %v189, %v193
    %v196 = vmul.f32 %v191, %v194
    %v197 = vpack.c.bf16 %v196, %v195
    %v198 = vld [vmem:[%s8] sm:$0xff]
    %v199 = vld [vmem:[%s8 + $0x8] sm:$0xff]
    %v200 = vld [vmem:[%s8 + $0x10] sm:$0xff]
    %v201 = vld [vmem:[%s8 + $0x18] sm:$0xff]
    %v202 = vld [vmem:[%s9] sm:$0x3]
    %v204 = vperm.slane %v202, 0
    %v205 = vperm.slane %v202, 1
    %v212 = vunpack.c.l.b16 %v198
    %v213 = vunpack.c.h.b16 %v198
    %v214 = vunpack.c.l.b16 %v199
    %v215 = vunpack.c.h.b16 %v199
    %v216 = vunpack.c.l.b16 %v200
    %v217 = vunpack.c.h.b16 %v200
    %v218 = vunpack.c.l.b16 %v201
    %v219 = vunpack.c.h.b16 %v201
    %v220 = vpack.c.b16 %v214, %v212
    %v221 = vpack.c.b16 %v215, %v213
    %v222 = vpack.c.b16 %v218, %v216
    %v223 = vpack.c.b16 %v219, %v217
    %vm228 = vcmask 261120
    %v230 = vsel %vm228, %v197, 0
    %232 = vmatpush.bf16.msra.mxu0 0
    %233 = vmatpush.bf16.msra.mxu0 0
    %234 = vmatpush.bf16.msra.mxu0 0
    %235 = vmatpush.bf16.msra.mxu0 0
    %236 = vmatpush.bf16.msra.mxu0 0
    %237 = vmatpush.bf16.msra.mxu0 0
    %238 = vmatpush.bf16.msra.mxu0 %v222
    %239 = vmatpush.bf16.msra.mxu0 %v220
    %240 = vmatmul.bf16.gmra.mxu0 %v230
    %v241 = vpop.f32.mrf.mxu0
    %v242 = vadd.f32 %v204, %v241
    %v243 = vpop.f32.mrf.mxu0
    %v244 = vadd.f32 %v204, %v243
    %245 = vdwg.mxu0
    %246 = vmatpush.bf16.msra.mxu0 0
    %247 = vmatpush.bf16.msra.mxu0 0
    %248 = vmatpush.bf16.msra.mxu0 0
    %249 = vmatpush.bf16.msra.mxu0 0
    %250 = vmatpush.bf16.msra.mxu0 0
    %251 = vmatpush.bf16.msra.mxu0 0
    %252 = vmatpush.bf16.msra.mxu0 %v223
    %253 = vmatpush.bf16.msra.mxu0 %v221
    %254 = vmatmul.bf16.gmra.mxu0 %v230
    %v255 = vpop.f32.mrf.mxu0
    %v256 = vadd.f32 %v205, %v255
    %v257 = vpop.f32.mrf.mxu0
    %v258 = vadd.f32 %v205, %v257
    %259 = vdwg.mxu0
    %v260 = vtanh.pop %v242
    %v261 = vtanh.pop %v244
    %v264 = vrot.slane %v260, 2
    %v265 = vrot.slane %v260, 4
    %v266 = vrot.slane %v260, 6
    %v267 = vrot.slane %v261, 2
    %v268 = vrot.slane %v261, 4
    %v269 = vrot.slane %v261, 6
    %v270 = vxor.u32 %v242, 2147483648
    %v271 = vxor.u32 %v244, 2147483648
    %v272 = vmul.f32 %v270, 1.442695
    %v273 = vpow.pop %v272
    %v274 = vmul.f32 %v271, 1.442695
    %v275 = vpow.pop %v274
    %v276 = vadd.f32 %v273, 1.0
    %v277 = vadd.f32 %v275, 1.0
    %v278 = vrcp.pop %v276
    %v279 = vmul.f32 %v276, %v278
    %v280 = vsub.f32 1.0, %v279
    %v281 = vmul.f32 %v278, %v280
    %v282 = vadd.f32 %v278, %v281
    %vm283 = vweird.f32 %v276
    %vm284 = vweird.f32 %v278
    %vm285 = vmor %vm283, %vm284
    %v286 = vsel %vm285, %v278, %v282
    %v287 = vand.u32 2147483647, %v276
    %vm288 = vcmp.eq.f32.partialorder %v287, 8.507059e+37
    %v289 = vand.u32 %v276, 2147483648
    %v290 = vor.u32 1.1754944e-38, %v289
    %v291 = vsel %vm288, %v290, %v286
    %v292 = vmul.f32 1.0, %v291
    %v293 = vrcp.pop %v277
    %v294 = vmul.f32 %v277, %v293
    %v295 = vsub.f32 1.0, %v294
    %v296 = vmul.f32 %v293, %v295
    %v297 = vadd.f32 %v293, %v296
    %vm298 = vweird.f32 %v277
    %vm299 = vweird.f32 %v293
    %vm300 = vmor %vm298, %vm299
    %v301 = vsel %vm300, %v293, %v297
    %v302 = vand.u32 2147483647, %v277
    %vm303 = vcmp.eq.f32.partialorder %v302, 8.507059e+37
    %v304 = vand.u32 %v277, 2147483648
    %v305 = vor.u32 1.1754944e-38, %v304
    %v306 = vsel %vm303, %v305, %v301
    %v307 = vmul.f32 1.0, %v306
    %v310 = vrot.slane %v292, 2
    %v311 = vrot.slane %v292, 4
    %v312 = vrot.slane %v292, 6
    %v313 = vrot.slane %v307, 2
    %v314 = vrot.slane %v307, 4
    %v315 = vrot.slane %v307, 6
    %v322 = vxor.u32 %v256, 2147483648
    %v323 = vxor.u32 %v258, 2147483648
    %v324 = vmul.f32 %v322, 1.442695
    %v325 = vpow.pop %v324
    %v326 = vmul.f32 %v323, 1.442695
    %v327 = vpow.pop %v326
    %v328 = vadd.f32 %v325, 1.0
    %v329 = vadd.f32 %v327, 1.0
    %v330 = vrcp.pop %v328
    %v331 = vmul.f32 %v328, %v330
    %v332 = vsub.f32 1.0, %v331
    %v333 = vmul.f32 %v330, %v332
    %v334 = vadd.f32 %v330, %v333
    %vm335 = vweird.f32 %v328
    %vm336 = vweird.f32 %v330
    %vm337 = vmor %vm335, %vm336
    %v338 = vsel %vm337, %v330, %v334
    %v339 = vand.u32 2147483647, %v328
    %vm340 = vcmp.eq.f32.partialorder %v339, 8.507059e+37
    %v341 = vand.u32 %v328, 2147483648
    %v342 = vor.u32 1.1754944e-38, %v341
    %v343 = vsel %vm340, %v342, %v338
    %v344 = vmul.f32 1.0, %v343
    %v345 = vrcp.pop %v329
    %v346 = vmul.f32 %v329, %v345
    %v347 = vsub.f32 1.0, %v346
    %v348 = vmul.f32 %v345, %v347
    %v349 = vadd.f32 %v345, %v348
    %vm350 = vweird.f32 %v329
    %vm351 = vweird.f32 %v345
    %vm352 = vmor %vm350, %vm351
    %v353 = vsel %vm352, %v345, %v349
    %v354 = vand.u32 2147483647, %v329
    %vm355 = vcmp.eq.f32.partialorder %v354, 8.507059e+37
    %v356 = vand.u32 %v329, 2147483648
    %v357 = vor.u32 1.1754944e-38, %v356
    %v358 = vsel %vm355, %v357, %v353
    %v359 = vmul.f32 1.0, %v358
    %v362 = vrot.slane %v344, 2
    %v363 = vrot.slane %v344, 4
    %v364 = vrot.slane %v344, 6
    %v365 = vrot.slane %v359, 2
    %v366 = vrot.slane %v359, 4
    %v367 = vrot.slane %v359, 6
    %v374 = vld [vmem:[#allocation3] sm:$0x3]
    %v375 = vsub.f32 1.0, %v292
    %v376 = vsub.f32 1.0, %v310
    %v377 = vsub.f32 1.0, %v311
    %v378 = vsub.f32 1.0, %v312
    %v379 = vsub.f32 1.0, %v307
    %v380 = vsub.f32 1.0, %v313
    %v381 = vsub.f32 1.0, %v314
    %v382 = vsub.f32 1.0, %v315
    %383 = vrot.lane.b32.xlu0 %v260, 64
    %v384 = vpop.permute.xlu0 %383
    %385 = vrot.lane.b32.xlu0 %v264, 64
    %v386 = vpop.permute.xlu0 %385
    %387 = vrot.lane.b32.xlu0 %v265, 64
    %v388 = vpop.permute.xlu0 %387
    %389 = vrot.lane.b32.xlu0 %v266, 64
    %v390 = vpop.permute.xlu0 %389
    %391 = vrot.lane.b32.xlu0 %v261, 64
    %v392 = vpop.permute.xlu0 %391
    %393 = vrot.lane.b32.xlu0 %v267, 64
    %v394 = vpop.permute.xlu0 %393
    %395 = vrot.lane.b32.xlu0 %v268, 64
    %v396 = vpop.permute.xlu0 %395
    %397 = vrot.lane.b32.xlu0 %v269, 64
    %v398 = vpop.permute.xlu0 %397
    %v407 = vmul.f32 %v375, %v384
    %v408 = vmul.f32 %v376, %v386
    %v409 = vmul.f32 %v377, %v388
    %v410 = vmul.f32 %v378, %v390
    %v411 = vmul.f32 %v379, %v392
    %v412 = vmul.f32 %v380, %v394
    %v413 = vmul.f32 %v381, %v396
    %v414 = vmul.f32 %v382, %v398
    %416 = vrot.lane.b32.xlu0 %v374, 64
    %v417 = vpop.permute.xlu0 %416
    %v419 = vmul.f32 %v292, %v417
    %v420 = vadd.f32 %v419, %v407
    %422 = vrot.lane.b32.xlu0 %v420, 64
    %v423 = vpop.permute.xlu0 %422
    %v425 = vmul.f32 %v344, %v423
    %vm426 = vcmask 517120
    %427 = vst.msk [vmem:[#allocation2] sm:$0x3] %vm426, %v425
    %v428 = vmul.f32 %v310, %v420
    %v429 = vadd.f32 %v428, %v408
    %431 = vrot.lane.b32.xlu0 %v429, 64
    %v432 = vpop.permute.xlu0 %431
    %v434 = vmul.f32 %v362, %v432
    %s435 = scalar_lea.vmem [#allocation2], 2
    %436 = vst.msk [vmem:[%s435] sm:$0x3] %vm426, %v434
    %v437 = vmul.f32 %v311, %v429
    %v438 = vadd.f32 %v437, %v409
    %440 = vrot.lane.b32.xlu0 %v438, 64
    %v441 = vpop.permute.xlu0 %440
    %v443 = vmul.f32 %v363, %v441
    %s444 = scalar_lea.vmem [#allocation2], 4
    %445 = vst.msk [vmem:[%s444] sm:$0x3] %vm426, %v443
    %v446 = vmul.f32 %v312, %v438
    %v447 = vadd.f32 %v446, %v410
    %449 = vrot.lane.b32.xlu0 %v447, 64
    %v450 = vpop.permute.xlu0 %449
    %v452 = vmul.f32 %v364, %v450
    %s453 = scalar_lea.vmem [#allocation2], 6
    %454 = vst.msk [vmem:[%s453] sm:$0x3] %vm426, %v452
    %v455 = vmul.f32 %v307, %v447
    %v456 = vadd.f32 %v455, %v411
    %458 = vrot.lane.b32.xlu0 %v456, 64
    %v459 = vpop.permute.xlu0 %458
    %v461 = vmul.f32 %v359, %v459
    %s462 = scalar_lea.vmem [#allocation2], 8
    %463 = vst.msk [vmem:[%s462] sm:$0x3] %vm426, %v461
    %v464 = vmul.f32 %v313, %v456
    %v465 = vadd.f32 %v464, %v412
    %467 = vrot.lane.b32.xlu0 %v465, 64
    %v468 = vpop.permute.xlu0 %467
    %v470 = vmul.f32 %v365, %v468
    %s471 = scalar_lea.vmem [#allocation2], 10
    %472 = vst.msk [vmem:[%s471] sm:$0x3] %vm426, %v470
    %v473 = vmul.f32 %v314, %v465
    %v474 = vadd.f32 %v473, %v413
    %476 = vrot.lane.b32.xlu0 %v474, 64
    %v477 = vpop.permute.xlu0 %476
    %v479 = vmul.f32 %v366, %v477
    %s480 = scalar_lea.vmem [#allocation2], 12
    %481 = vst.msk [vmem:[%s480] sm:$0x3] %vm426, %v479
    %v482 = vmul.f32 %v315, %v474
    %v483 = vadd.f32 %v482, %v414
    %485 = vrot.lane.b32.xlu0 %v483, 64
    %v486 = vpop.permute.xlu0 %485
    %v488 = vmul.f32 %v367, %v486
    %s489 = scalar_lea.vmem [#allocation2], 14
    %490 = vst.msk [vmem:[%s489] sm:$0x3] %vm426, %v488
    %v491 = vld [vmem:[#allocation2] sm:$0x3]
    %v492 = vld [vmem:[#allocation2 + $0x2] sm:$0x3]
    %v493 = vld [vmem:[#allocation2 + $0x4] sm:$0x3]
    %v494 = vld [vmem:[#allocation2 + $0x6] sm:$0x3]
    %v495 = vld [vmem:[#allocation2 + $0x8] sm:$0x3]
    %v496 = vld [vmem:[#allocation2 + $0xa] sm:$0x3]
    %v497 = vld [vmem:[#allocation2 + $0xc] sm:$0x3]
    %v498 = vld [vmem:[#allocation2 + $0xe] sm:$0x3]
    %v499 = vld [vmem:[#allocation8] sm:$0xff]
    %v500 = vld [vmem:[#allocation8 + $0x8] sm:$0xff]
    %v503 = vrot.slane %v499, 2
    %v504 = vrot.slane %v499, 4
    %v505 = vrot.slane %v499, 6
    %v506 = vrot.slane %v500, 2
    %v507 = vrot.slane %v500, 4
    %v508 = vrot.slane %v500, 6
    %v515 = vmul.f32 %v491, %v499
    %v516 = vmul.f32 %v492, %v503
    %v517 = vmul.f32 %v493, %v504
    %v518 = vmul.f32 %v494, %v505
    %v519 = vmul.f32 %v495, %v500
    %v520 = vmul.f32 %v496, %v506
    %v521 = vmul.f32 %v497, %v507
    %v522 = vmul.f32 %v498, %v508
    %531 = vst [vmem:[#allocation1] ss:$4 sm:$0xff] %v515
    %s532 = scalar_lea.vmem [#allocation1], 1
    %533 = vst [vmem:[%s532] ss:$4 sm:$0xff] %v516
    %s534 = scalar_lea.vmem [#allocation1], 2
    %535 = vst [vmem:[%s534] ss:$4 sm:$0xff] %v517
    %s536 = scalar_lea.vmem [#allocation1], 3
    %537 = vst [vmem:[%s536] ss:$4 sm:$0xff] %v518
    %s538 = scalar_lea.vmem [#allocation1], 32
    %539 = vst [vmem:[%s538] ss:$4 sm:$0xff] %v519
    %s540 = scalar_lea.vmem [#allocation1], 33
    %541 = vst [vmem:[%s540] ss:$4 sm:$0xff] %v520
    %s542 = scalar_lea.vmem [#allocation1], 34
    %543 = vst [vmem:[%s542] ss:$4 sm:$0xff] %v521
    %s544 = scalar_lea.vmem [#allocation1], 35
    %545 = vst [vmem:[%s544] ss:$4 sm:$0xff] %v522
    %v546 = vld.sshfl [vmem:[#allocation1] sm:$0xff pattern:$0x73625140]
    %v547 = vld.sshfl [vmem:[#allocation1 + $0x20] sm:$0xff pattern:$0x73625140]
    %v550 = vpack.c.bf16 %v547, %v546
    %v551 = vld [vmem:[%s10] sm:$0xff]
    %v552 = vld [vmem:[%s10 + $0x8] sm:$0xff]
    %v553 = vld [vmem:[%s10 + $0x10] sm:$0xff]
    %v554 = vld [vmem:[%s10 + $0x18] sm:$0xff]
    %v555 = vld [vmem:[%s10 + $0x20] sm:$0xff]
    %v556 = vld [vmem:[%s10 + $0x28] sm:$0xff]
    %v557 = vld [vmem:[%s10 + $0x30] sm:$0xff]
    %v558 = vld [vmem:[%s10 + $0x38] sm:$0xff]
    %v559 = vld [vmem:[%s11] sm:$0x3]
    %v561 = vperm.slane %v559, 0
    %v562 = vperm.slane %v559, 1
    %v573 = vunpack.c.l.b16 %v551
    %v574 = vunpack.c.h.b16 %v551
    %v575 = vunpack.c.l.b16 %v552
    %v576 = vunpack.c.h.b16 %v552
    %v577 = vunpack.c.l.b16 %v553
    %v578 = vunpack.c.h.b16 %v553
    %v579 = vunpack.c.l.b16 %v554
    %v580 = vunpack.c.h.b16 %v554
    %v581 = vunpack.c.l.b16 %v555
    %v582 = vunpack.c.h.b16 %v555
    %v583 = vunpack.c.l.b16 %v556
    %v584 = vunpack.c.h.b16 %v556
    %v585 = vunpack.c.l.b16 %v557
    %v586 = vunpack.c.h.b16 %v557
    %v587 = vunpack.c.l.b16 %v558
    %v588 = vunpack.c.h.b16 %v558
    %v589 = vpack.c.b16 %v575, %v573
    %v590 = vpack.c.b16 %v576, %v574
    %v591 = vpack.c.b16 %v579, %v577
    %v592 = vpack.c.b16 %v580, %v578
    %v593 = vpack.c.b16 %v583, %v581
    %v594 = vpack.c.b16 %v584, %v582
    %v595 = vpack.c.b16 %v587, %v585
    %v596 = vpack.c.b16 %v588, %v586
    %vm605 = vcmask 523264
    %v607 = vsel %vm605, %v550, 0
    %609 = vmatpush.bf16.msra.mxu0 0
    %610 = vmatpush.bf16.msra.mxu0 0
    %611 = vmatpush.bf16.msra.mxu0 0
    %612 = vmatpush.bf16.msra.mxu0 0
    %613 = vmatpush.bf16.msra.mxu0 %v595
    %614 = vmatpush.bf16.msra.mxu0 %v593
    %615 = vmatpush.bf16.msra.mxu0 %v591
    %616 = vmatpush.bf16.msra.mxu0 %v589
    %617 = vmatmul.bf16.gmra.mxu0 %v607
    %v618 = vpop.f32.mrf.mxu0
    %v619 = vadd.f32 %v561, %v618
    %v620 = vpop.f32.mrf.mxu0
    %v621 = vadd.f32 %v561, %v620
    %622 = vdwg.mxu0
    %623 = vmatpush.bf16.msra.mxu0 0
    %624 = vmatpush.bf16.msra.mxu0 0
    %625 = vmatpush.bf16.msra.mxu0 0
    %626 = vmatpush.bf16.msra.mxu0 0
    %627 = vmatpush.bf16.msra.mxu0 %v596
    %628 = vmatpush.bf16.msra.mxu0 %v594
    %629 = vmatpush.bf16.msra.mxu0 %v592
    %630 = vmatpush.bf16.msra.mxu0 %v590
    %631 = vmatmul.bf16.gmra.mxu0 %v607
    %v632 = vpop.f32.mrf.mxu0
    %v633 = vadd.f32 %v562, %v632
    %v634 = vpop.f32.mrf.mxu0
    %v635 = vadd.f32 %v562, %v634
    %636 = vdwg.mxu0
    %v637 = vtanh.pop %v619
    %v638 = vtanh.pop %v621
    %v641 = vrot.slane %v637, 2
    %v642 = vrot.slane %v637, 4
    %v643 = vrot.slane %v637, 6
    %v644 = vrot.slane %v638, 2
    %v645 = vrot.slane %v638, 4
    %v646 = vrot.slane %v638, 6
    %v647 = vxor.u32 %v619, 2147483648
    %v648 = vxor.u32 %v621, 2147483648
    %v649 = vmul.f32 %v647, 1.442695
    %v650 = vpow.pop %v649
    %v651 = vmul.f32 %v648, 1.442695
    %v652 = vpow.pop %v651
    %v653 = vadd.f32 %v650, 1.0
    %v654 = vadd.f32 %v652, 1.0
    %v655 = vrcp.pop %v653
    %v656 = vmul.f32 %v653, %v655
    %v657 = vsub.f32 1.0, %v656
    %v658 = vmul.f32 %v655, %v657
    %v659 = vadd.f32 %v655, %v658
    %vm660 = vweird.f32 %v653
    %vm661 = vweird.f32 %v655
    %vm662 = vmor %vm660, %vm661
    %v663 = vsel %vm662, %v655, %v659
    %v664 = vand.u32 2147483647, %v653
    %vm665 = vcmp.eq.f32.partialorder %v664, 8.507059e+37
    %v666 = vand.u32 %v653, 2147483648
    %v667 = vor.u32 1.1754944e-38, %v666
    %v668 = vsel %vm665, %v667, %v663
    %v669 = vmul.f32 1.0, %v668
    %v670 = vrcp.pop %v654
    %v671 = vmul.f32 %v654, %v670
    %v672 = vsub.f32 1.0, %v671
    %v673 = vmul.f32 %v670, %v672
    %v674 = vadd.f32 %v670, %v673
    %vm675 = vweird.f32 %v654
    %vm676 = vweird.f32 %v670
    %vm677 = vmor %vm675, %vm676
    %v678 = vsel %vm677, %v670, %v674
    %v679 = vand.u32 2147483647, %v654
    %vm680 = vcmp.eq.f32.partialorder %v679, 8.507059e+37
    %v681 = vand.u32 %v654, 2147483648
    %v682 = vor.u32 1.1754944e-38, %v681
    %v683 = vsel %vm680, %v682, %v678
    %v684 = vmul.f32 1.0, %v683
    %v687 = vrot.slane %v669, 2
    %v688 = vrot.slane %v669, 4
    %v689 = vrot.slane %v669, 6
    %v690 = vrot.slane %v684, 2
    %v691 = vrot.slane %v684, 4
    %v692 = vrot.slane %v684, 6
    %v699 = vxor.u32 %v633, 2147483648
    %v700 = vxor.u32 %v635, 2147483648
    %v701 = vmul.f32 %v699, 1.442695
    %v702 = vpow.pop %v701
    %v703 = vmul.f32 %v700, 1.442695
    %v704 = vpow.pop %v703
    %v705 = vadd.f32 %v702, 1.0
    %v706 = vadd.f32 %v704, 1.0
    %v707 = vrcp.pop %v705
    %v708 = vmul.f32 %v705, %v707
    %v709 = vsub.f32 1.0, %v708
    %v710 = vmul.f32 %v707, %v709
    %v711 = vadd.f32 %v707, %v710
    %vm712 = vweird.f32 %v705
    %vm713 = vweird.f32 %v707
    %vm714 = vmor %vm712, %vm713
    %v715 = vsel %vm714, %v707, %v711
    %v716 = vand.u32 2147483647, %v705
    %vm717 = vcmp.eq.f32.partialorder %v716, 8.507059e+37
    %v718 = vand.u32 %v705, 2147483648
    %v719 = vor.u32 1.1754944e-38, %v718
    %v720 = vsel %vm717, %v719, %v715
    %v721 = vmul.f32 1.0, %v720
    %v722 = vrcp.pop %v706
    %v723 = vmul.f32 %v706, %v722
    %v724 = vsub.f32 1.0, %v723
    %v725 = vmul.f32 %v722, %v724
    %v726 = vadd.f32 %v722, %v725
    %vm727 = vweird.f32 %v706
    %vm728 = vweird.f32 %v722
    %vm729 = vmor %vm727, %vm728
    %v730 = vsel %vm729, %v722, %v726
    %v731 = vand.u32 2147483647, %v706
    %vm732 = vcmp.eq.f32.partialorder %v731, 8.507059e+37
    %v733 = vand.u32 %v706, 2147483648
    %v734 = vor.u32 1.1754944e-38, %v733
    %v735 = vsel %vm732, %v734, %v730
    %v736 = vmul.f32 1.0, %v735
    %v739 = vrot.slane %v721, 2
    %v740 = vrot.slane %v721, 4
    %v741 = vrot.slane %v721, 6
    %v742 = vrot.slane %v736, 2
    %v743 = vrot.slane %v736, 4
    %v744 = vrot.slane %v736, 6
    %s751 = scalar_lea.vmem [#allocation3], 2
    %v752 = vld [vmem:[%s751] sm:$0x3]
    %v753 = vsub.f32 1.0, %v669
    %v754 = vsub.f32 1.0, %v687
    %v755 = vsub.f32 1.0, %v688
    %v756 = vsub.f32 1.0, %v689
    %v757 = vsub.f32 1.0, %v684
    %v758 = vsub.f32 1.0, %v690
    %v759 = vsub.f32 1.0, %v691
    %v760 = vsub.f32 1.0, %v692
    %761 = vrot.lane.b32.xlu0 %v637, 64
    %v762 = vpop.permute.xlu0 %761
    %763 = vrot.lane.b32.xlu0 %v641, 64
    %v764 = vpop.permute.xlu0 %763
    %765 = vrot.lane.b32.xlu0 %v642, 64
    %v766 = vpop.permute.xlu0 %765
    %767 = vrot.lane.b32.xlu0 %v643, 64
    %v768 = vpop.permute.xlu0 %767
    %769 = vrot.lane.b32.xlu0 %v638, 64
    %v770 = vpop.permute.xlu0 %769
    %771 = vrot.lane.b32.xlu0 %v644, 64
    %v772 = vpop.permute.xlu0 %771
    %773 = vrot.lane.b32.xlu0 %v645, 64
    %v774 = vpop.permute.xlu0 %773
    %775 = vrot.lane.b32.xlu0 %v646, 64
    %v776 = vpop.permute.xlu0 %775
    %v785 = vmul.f32 %v753, %v762
    %v786 = vmul.f32 %v754, %v764
    %v787 = vmul.f32 %v755, %v766
    %v788 = vmul.f32 %v756, %v768
    %v789 = vmul.f32 %v757, %v770
    %v790 = vmul.f32 %v758, %v772
    %v791 = vmul.f32 %v759, %v774
    %v792 = vmul.f32 %v760, %v776
    %794 = vrot.lane.b32.xlu0 %v752, 64
    %v795 = vpop.permute.xlu0 %794
    %v797 = vmul.f32 %v669, %v795
    %v798 = vadd.f32 %v797, %v785
    %800 = vrot.lane.b32.xlu0 %v798, 64
    %v801 = vpop.permute.xlu0 %800
    %v803 = vmul.f32 %v721, %v801
    %804 = vst.msk [vmem:[#allocation2] sm:$0x3] %vm426, %v803
    %v805 = vmul.f32 %v687, %v798
    %v806 = vadd.f32 %v805, %v786
    %808 = vrot.lane.b32.xlu0 %v806, 64
    %v809 = vpop.permute.xlu0 %808
    %v811 = vmul.f32 %v739, %v809
    %812 = vst.msk [vmem:[%s435] sm:$0x3] %vm426, %v811
    %v813 = vmul.f32 %v688, %v806
    %v814 = vadd.f32 %v813, %v787
    %816 = vrot.lane.b32.xlu0 %v814, 64
    %v817 = vpop.permute.xlu0 %816
    %v819 = vmul.f32 %v740, %v817
    %820 = vst.msk [vmem:[%s444] sm:$0x3] %vm426, %v819
    %v821 = vmul.f32 %v689, %v814
    %v822 = vadd.f32 %v821, %v788
    %824 = vrot.lane.b32.xlu0 %v822, 64
    %v825 = vpop.permute.xlu0 %824
    %v827 = vmul.f32 %v741, %v825
    %828 = vst.msk [vmem:[%s453] sm:$0x3] %vm426, %v827
    %v829 = vmul.f32 %v684, %v822
    %v830 = vadd.f32 %v829, %v789
    %832 = vrot.lane.b32.xlu0 %v830, 64
    %v833 = vpop.permute.xlu0 %832
    %v835 = vmul.f32 %v736, %v833
    %836 = vst.msk [vmem:[%s462] sm:$0x3] %vm426, %v835
    %v837 = vmul.f32 %v690, %v830
    %v838 = vadd.f32 %v837, %v790
    %840 = vrot.lane.b32.xlu0 %v838, 64
    %v841 = vpop.permute.xlu0 %840
    %v843 = vmul.f32 %v742, %v841
    %844 = vst.msk [vmem:[%s471] sm:$0x3] %vm426, %v843
    %v845 = vmul.f32 %v691, %v838
    %v846 = vadd.f32 %v845, %v791
    %848 = vrot.lane.b32.xlu0 %v846, 64
    %v849 = vpop.permute.xlu0 %848
    %v851 = vmul.f32 %v743, %v849
    %852 = vst.msk [vmem:[%s480] sm:$0x3] %vm426, %v851
    %v853 = vmul.f32 %v692, %v846
    %v854 = vadd.f32 %v853, %v792
    %856 = vrot.lane.b32.xlu0 %v854, 64
    %v857 = vpop.permute.xlu0 %856
    %v859 = vmul.f32 %v744, %v857
    %860 = vst.msk [vmem:[%s489] sm:$0x3] %vm426, %v859
    %v861 = vld [vmem:[#allocation2] sm:$0x3]
    %v862 = vld [vmem:[#allocation2 + $0x2] sm:$0x3]
    %v863 = vld [vmem:[#allocation2 + $0x4] sm:$0x3]
    %v864 = vld [vmem:[#allocation2 + $0x6] sm:$0x3]
    %v865 = vld [vmem:[#allocation2 + $0x8] sm:$0x3]
    %v866 = vld [vmem:[#allocation2 + $0xa] sm:$0x3]
    %v867 = vld [vmem:[#allocation2 + $0xc] sm:$0x3]
    %v868 = vld [vmem:[#allocation2 + $0xe] sm:$0x3]
    %v869 = vld [vmem:[#allocation9] sm:$0xff]
    %v870 = vld [vmem:[#allocation9 + $0x8] sm:$0xff]
    %v873 = vrot.slane %v869, 2
    %v874 = vrot.slane %v869, 4
    %v875 = vrot.slane %v869, 6
    %v876 = vrot.slane %v870, 2
    %v877 = vrot.slane %v870, 4
    %v878 = vrot.slane %v870, 6
    %v885 = vmul.f32 %v861, %v869
    %v886 = vmul.f32 %v862, %v873
    %v887 = vmul.f32 %v863, %v874
    %v888 = vmul.f32 %v864, %v875
    %v889 = vmul.f32 %v865, %v870
    %v890 = vmul.f32 %v866, %v876
    %v891 = vmul.f32 %v867, %v877
    %v892 = vmul.f32 %v868, %v878
    %893 = vst [vmem:[#allocation1] ss:$4 sm:$0xff] %v483
    %v894 = vld.sshfl [vmem:[#allocation1] sm:$0xff pattern:$0x73625140]
    %895 = vrot.lane.b32.xlu0 %v894, 64
    %v896 = vpop.permute.xlu0 %895
    %898 = vst.msk [vmem:[#allocation12] sm:$0x3] %vm426, %v896
    %899 = vst [vmem:[#allocation1] ss:$4 sm:$0xff] %v854
    %v900 = vld.sshfl [vmem:[#allocation1] sm:$0xff pattern:$0x73625140]
    %901 = vrot.lane.b32.xlu0 %v900, 64
    %v902 = vpop.permute.xlu0 %901
    %s904 = scalar_lea.vmem [#allocation12], 2
    %905 = vst.msk [vmem:[%s904] sm:$0x3] %vm426, %v902
    %v906 = vrot.slane %v886, 4
    %vm907 = vcmask 1047556
    %v908 = vsel %vm907, %v906, %v885
    %v910 = vunpack.c.l.s4 1934713408
    %v911 = vunpack.c.0.s8 %v910
    %v912 = vperm.slane %v908, %v911
    %v913 = vrot.slane %v912, 4
    %v914 = vsel %vm907, 0.0, %v913
    %v915 = vrot.slane %v888, 4
    %v916 = vsel %vm907, %v915, %v887
    %v918 = vunpack.c.l.s4 1934713408
    %v919 = vunpack.c.0.s8 %v918
    %v920 = vperm.slane %v916, %v919
    %v921 = vrot.slane %v920, 4
    %v922 = vsel %vm907, 0.0, %v921
    %v923 = vrot.slane %v890, 4
    %v924 = vsel %vm907, %v923, %v889
    %v926 = vunpack.c.l.s4 1934713408
    %v927 = vunpack.c.0.s8 %v926
    %v928 = vperm.slane %v924, %v927
    %v929 = vrot.slane %v928, 4
    %v930 = vsel %vm907, 0.0, %v929
    %v931 = vrot.slane %v892, 4
    %v932 = vsel %vm907, %v931, %v891
    %v934 = vunpack.c.l.s4 1934713408
    %v935 = vunpack.c.0.s8 %v934
    %v936 = vperm.slane %v932, %v935
    %v937 = vrot.slane %v936, 4
    %v938 = vsel %vm907, 0.0, %v937
    %v939 = vld [vmem:[%s3] sm:$0xf]
    %v940 = vld [vmem:[%s3 + $0x4] sm:$0xf]
    %v941 = vld [vmem:[%s3 + $0x8] sm:$0xf]
    %v942 = vld [vmem:[%s3 + $0xc] sm:$0xf]
    %v943 = vld [vmem:[%s3 + $0x10] sm:$0xf]
    %v944 = vld [vmem:[%s3 + $0x14] sm:$0xf]
    %v945 = vld [vmem:[%s3 + $0x18] sm:$0xf]
    %v946 = vld [vmem:[%s3 + $0x1c] sm:$0xf]
    %v947 = vld [vmem:[%s3 + $0x20] sm:$0xf]
    %v948 = vld [vmem:[%s3 + $0x24] sm:$0xf]
    %v949 = vld [vmem:[%s3 + $0x28] sm:$0xf]
    %v950 = vld [vmem:[%s3 + $0x2c] sm:$0xf]
    %v951 = vld [vmem:[%s3 + $0x30] sm:$0xf]
    %v952 = vld [vmem:[%s3 + $0x34] sm:$0xf]
    %v953 = vld [vmem:[%s3 + $0x38] sm:$0xf]
    %v954 = vld [vmem:[%s3 + $0x3c] sm:$0xf]
    %v955 = vld [vmem:[%s3 + $0x40] sm:$0xf]
    %v956 = vld [vmem:[%s3 + $0x44] sm:$0xf]
    %v957 = vld [vmem:[%s3 + $0x48] sm:$0xf]
    %v958 = vld [vmem:[%s3 + $0x4c] sm:$0xf]
    %v959 = vld [vmem:[%s3 + $0x50] sm:$0xf]
    %v960 = vld [vmem:[%s3 + $0x54] sm:$0xf]
    %v961 = vld [vmem:[%s3 + $0x58] sm:$0xf]
    %v962 = vld [vmem:[%s3 + $0x5c] sm:$0xf]
    %v963 = vld [vmem:[%s3 + $0x60] sm:$0xf]
    %v964 = vld [vmem:[%s3 + $0x64] sm:$0xf]
    %v965 = vld [vmem:[%s3 + $0x68] sm:$0xf]
    %v966 = vld [vmem:[%s3 + $0x6c] sm:$0xf]
    %v967 = vld [vmem:[%s3 + $0x70] sm:$0xf]
    %v968 = vld [vmem:[%s3 + $0x74] sm:$0xf]
    %v969 = vld [vmem:[%s3 + $0x78] sm:$0xf]
    %v970 = vld [vmem:[%s3 + $0x7c] sm:$0xf]
    %979 = vst [vmem:[#allocation1] ss:$4 sm:$0xff] %v912
    %s980 = scalar_lea.vmem [#allocation1], 1
    %981 = vst [vmem:[%s980] ss:$4 sm:$0xff] %v920
    %s982 = scalar_lea.vmem [#allocation1], 2
    %983 = vst [vmem:[%s982] ss:$4 sm:$0xff] %v928
    %s984 = scalar_lea.vmem [#allocation1], 3
    %985 = vst [vmem:[%s984] ss:$4 sm:$0xff] %v936
    %v986 = vld.sshfl [vmem:[#allocation1] sm:$0xff pattern:$0x73625140]
    %s987 = scalar_lea.vmem [#allocation1], 32
    %988 = vst [vmem:[%s987] ss:$4 sm:$0xff] %v914
    %s989 = scalar_lea.vmem [#allocation1], 33
    %990 = vst [vmem:[%s989] ss:$4 sm:$0xff] %v922
    %s991 = scalar_lea.vmem [#allocation1], 34
    %992 = vst [vmem:[%s991] ss:$4 sm:$0xff] %v930
    %s993 = scalar_lea.vmem [#allocation1], 35
    %994 = vst [vmem:[%s993] ss:$4 sm:$0xff] %v938
    %v995 = vld.sshfl [vmem:[#allocation1 + $0x20] sm:$0xff pattern:$0x73625140]
    %v998 = vpack.c.bf16 %v986, %v986
    %v999 = vpack.c.bf16 %v995, %v995
    %v1016 = vunpack.c.l.b16 %v939
    %v1017 = vunpack.c.l.b16 %v940
    %v1018 = vunpack.c.l.b16 %v941
    %v1019 = vunpack.c.l.b16 %v942
    %v1020 = vunpack.c.l.b16 %v943
    %v1021 = vunpack.c.l.b16 %v944
    %v1022 = vunpack.c.l.b16 %v945
    %v1023 = vunpack.c.l.b16 %v946
    %v1024 = vunpack.c.l.b16 %v947
    %v1025 = vunpack.c.l.b16 %v948
    %v1026 = vunpack.c.l.b16 %v949
    %v1027 = vunpack.c.l.b16 %v950
    %v1028 = vunpack.c.l.b16 %v951
    %v1029 = vunpack.c.l.b16 %v952
    %v1030 = vunpack.c.l.b16 %v953
    %v1031 = vunpack.c.l.b16 %v954
    %v1032 = vpack.c.b16 %v1017, %v1016
    %v1033 = vpack.c.b16 %v1019, %v1018
    %v1034 = vpack.c.b16 %v1021, %v1020
    %v1035 = vpack.c.b16 %v1023, %v1022
    %v1036 = vpack.c.b16 %v1025, %v1024
    %v1037 = vpack.c.b16 %v1027, %v1026
    %v1038 = vpack.c.b16 %v1029, %v1028
    %v1039 = vpack.c.b16 %v1031, %v1030
    %v1041 = vsel %vm605, %v998, 0
    %v1044 = vsel %vm605, %v1032, 0
    %v1047 = vsel %vm605, %v1033, 0
    %v1050 = vsel %vm605, %v1034, 0
    %v1053 = vsel %vm605, %v1035, 0
    %v1056 = vsel %vm605, %v1036, 0
    %v1059 = vsel %vm605, %v1037, 0
    %v1062 = vsel %vm605, %v1038, 0
    %v1065 = vsel %vm605, %v1039, 0
    %1067 = vmatpush.bf16.xpose.msra.mxu0 %v1065
    %1068 = vmatpush.bf16.xpose.msra.mxu0 %v1062
    %1069 = vmatpush.bf16.xpose.msra.mxu0 %v1059
    %1070 = vmatpush.bf16.xpose.msra.mxu0 %v1056
    %1071 = vmatpush.bf16.xpose.msra.mxu0 %v1053
    %1072 = vmatpush.bf16.xpose.msra.mxu0 %v1050
    %1073 = vmatpush.bf16.xpose.msra.mxu0 %v1047
    %1074 = vmatpush.bf16.xpose.msra.mxu0 %v1044
    %1075 = vmatmul.bf16.gmra.mxu0 %v1041
    %v1076 = vpop.f32.mrf.mxu0
    %v1077 = vadd.f32 0.0, %v1076
    %v1078 = vpop.f32.mrf.mxu0
    %1079 = vdwg.mxu0
    %v1096 = vunpack.c.l.b16 %v955
    %v1097 = vunpack.c.l.b16 %v956
    %v1098 = vunpack.c.l.b16 %v957
    %v1099 = vunpack.c.l.b16 %v958
    %v1100 = vunpack.c.l.b16 %v959
    %v1101 = vunpack.c.l.b16 %v960
    %v1102 = vunpack.c.l.b16 %v961
    %v1103 = vunpack.c.l.b16 %v962
    %v1104 = vunpack.c.l.b16 %v963
    %v1105 = vunpack.c.l.b16 %v964
    %v1106 = vunpack.c.l.b16 %v965
    %v1107 = vunpack.c.l.b16 %v966
    %v1108 = vunpack.c.l.b16 %v967
    %v1109 = vunpack.c.l.b16 %v968
    %v1110 = vunpack.c.l.b16 %v969
    %v1111 = vunpack.c.l.b16 %v970
    %v1112 = vpack.c.b16 %v1097, %v1096
    %v1113 = vpack.c.b16 %v1099, %v1098
    %v1114 = vpack.c.b16 %v1101, %v1100
    %v1115 = vpack.c.b16 %v1103, %v1102
    %v1116 = vpack.c.b16 %v1105, %v1104
    %v1117 = vpack.c.b16 %v1107, %v1106
    %v1118 = vpack.c.b16 %v1109, %v1108
    %v1119 = vpack.c.b16 %v1111, %v1110
    %v1121 = vsel %vm605, %v999, 0
    %v1124 = vsel %vm605, %v1112, 0
    %v1127 = vsel %vm605, %v1113, 0
    %v1130 = vsel %vm605, %v1114, 0
    %v1133 = vsel %vm605, %v1115, 0
    %v1136 = vsel %vm605, %v1116, 0
    %v1139 = vsel %vm605, %v1117, 0
    %v1142 = vsel %vm605, %v1118, 0
    %v1145 = vsel %vm605, %v1119, 0
    %1147 = vmatpush.bf16.xpose.msra.mxu0 %v1145
    %1148 = vmatpush.bf16.xpose.msra.mxu0 %v1142
    %1149 = vmatpush.bf16.xpose.msra.mxu0 %v1139
    %1150 = vmatpush.bf16.xpose.msra.mxu0 %v1136
    %1151 = vmatpush.bf16.xpose.msra.mxu0 %v1133
    %1152 = vmatpush.bf16.xpose.msra.mxu0 %v1130
    %1153 = vmatpush.bf16.xpose.msra.mxu0 %v1127
    %1154 = vmatpush.bf16.xpose.msra.mxu0 %v1124
    %1155 = vmatmul.bf16.gmra.mxu0 %v1121
    %v1156 = vpop.f32.mrf.mxu0
    %v1157 = vadd.f32 0.0, %v1156
    %v1158 = vpop.f32.mrf.mxu0
    %1159 = vdwg.mxu0
    %v1160 = vld [vmem:[%s4] sm:$0x3]
    %v1162 = vrot.slane %v1160, 1
    %vm1164 = vcmp.gt.f32.partialorder %v1160, 0.0
    %vm1165 = vcmp.gt.f32.partialorder %v1162, 0.0
    %v1166 = vsel %vm1164, 1, 0
    %v1167 = vsel %vm1165, 1, 0
    %v1168 = vperm.slane %v1166, 0
    %v1169 = vperm.slane %v1167, 0
    %vm1170 = vcmp.eq.s32.totalorder %v1168, 1
    %vm1171 = vcmp.eq.s32.totalorder %v1169, 1
    %v1172 = vsel %vm1170, %v1077, -1e+09
    %v1173 = vsel %vm1171, %v1157, -1e+09
    %1174 = vmax.xlane.f32.xlu0 %v1172
    %v1175 = vpop.xlane.xlu0 %1174
    %1176 = vmax.xlane.f32.xlu0 %v1173
    %v1177 = vpop.xlane.xlu0 %1176
    %v1178 = vsub.f32 %v1172, %v1175
    %v1179 = vsub.f32 %v1173, %v1177
    %v1180 = vmul.f32 %v1178, 1.442695
    %v1181 = vpow.pop %v1180
    %v1182 = vmul.f32 %v1179, 1.442695
    %v1183 = vpow.pop %v1182
    %1184 = vadd.xlane.f32.xlu0 %v1181
    %v1185 = vpop.xlane.xlu0 %1184
    %1186 = vadd.xlane.f32.xlu0 %v1183
    %v1187 = vpop.xlane.xlu0 %1186
    %v1188 = vrcp.pop %v1185
    %v1189 = vmul.f32 %v1185, %v1188
    %v1190 = vsub.f32 1.0, %v1189
    %v1191 = vmul.f32 %v1188, %v1190
    %v1192 = vadd.f32 %v1188, %v1191
    %vm1193 = vweird.f32 %v1185
    %vm1194 = vweird.f32 %v1188
    %vm1195 = vmor %vm1193, %vm1194
    %v1196 = vsel %vm1195, %v1188, %v1192
    %v1197 = vand.u32 2147483647, %v1185
    %vm1198 = vcmp.eq.f32.partialorder %v1197, 8.507059e+37
    %v1199 = vand.u32 %v1185, 2147483648
    %v1200 = vor.u32 1.1754944e-38, %v1199
    %v1201 = vsel %vm1198, %v1200, %v1196
    %v1202 = vmul.f32 1.0, %v1201
    %v1203 = vrcp.pop %v1187
    %v1204 = vmul.f32 %v1187, %v1203
    %v1205 = vsub.f32 1.0, %v1204
    %v1206 = vmul.f32 %v1203, %v1205
    %v1207 = vadd.f32 %v1203, %v1206
    %vm1208 = vweird.f32 %v1187
    %vm1209 = vweird.f32 %v1203
    %vm1210 = vmor %vm1208, %vm1209
    %v1211 = vsel %vm1210, %v1203, %v1207
    %v1212 = vand.u32 2147483647, %v1187
    %vm1213 = vcmp.eq.f32.partialorder %v1212, 8.507059e+37
    %v1214 = vand.u32 %v1187, 2147483648
    %v1215 = vor.u32 1.1754944e-38, %v1214
    %v1216 = vsel %vm1213, %v1215, %v1211
    %v1217 = vmul.f32 1.0, %v1216
    %v1218 = vmul.f32 %v1181, %v1202
    %v1219 = vmul.f32 %v1183, %v1217
    %1220 = vst [vmem:[#allocation14] sm:$0xff] %v1218
    %1221 = vst [vmem:[#allocation14 + $0x8] sm:$0xff] %v1219
    %v1222 = vpack.c.bf16 %v1218, %v1218
    %v1223 = vpack.c.bf16 %v1219, %v1219
    %1232 = vmatpush.bf16.msra.mxu0 %v1039
    %1233 = vmatpush.bf16.msra.mxu0 %v1038
    %1234 = vmatpush.bf16.msra.mxu0 %v1037
    %1235 = vmatpush.bf16.msra.mxu0 %v1036
    %1236 = vmatpush.bf16.msra.mxu0 %v1035
    %1237 = vmatpush.bf16.msra.mxu0 %v1034
    %1238 = vmatpush.bf16.msra.mxu0 %v1033
    %1239 = vmatpush.bf16.msra.mxu0 %v1032
    %1240 = vmatmul.bf16.gmra.mxu0 %v1222
    %v1241 = vpop.f32.mrf.mxu0
    %v1242 = vadd.f32 0.0, %v1241
    %v1243 = vpop.f32.mrf.mxu0
    %1244 = vdwg.mxu0
    %1253 = vmatpush.bf16.msra.mxu0 %v1119
    %1254 = vmatpush.bf16.msra.mxu0 %v1118
    %1255 = vmatpush.bf16.msra.mxu0 %v1117
    %1256 = vmatpush.bf16.msra.mxu0 %v1116
    %1257 = vmatpush.bf16.msra.mxu0 %v1115
    %1258 = vmatpush.bf16.msra.mxu0 %v1114
    %1259 = vmatpush.bf16.msra.mxu0 %v1113
    %1260 = vmatpush.bf16.msra.mxu0 %v1112
    %1261 = vmatmul.bf16.gmra.mxu0 %v1223
    %v1262 = vpop.f32.mrf.mxu0
    %v1263 = vadd.f32 0.0, %v1262
    %v1264 = vpop.f32.mrf.mxu0
    %1265 = vdwg.mxu0
    %v1266 = vpack.c.bf16 %v1263, %v1242
    %v1267 = vld [vmem:[%s12] sm:$0xf]
    %v1268 = vld [vmem:[%s12 + $0x4] sm:$0xf]
    %v1269 = vld [vmem:[%s12 + $0x8] sm:$0xf]
    %v1270 = vld [vmem:[%s12 + $0xc] sm:$0xf]
    %v1271 = vld [vmem:[%s12 + $0x10] sm:$0xf]
    %v1272 = vld [vmem:[%s12 + $0x14] sm:$0xf]
    %v1273 = vld [vmem:[%s12 + $0x18] sm:$0xf]
    %v1274 = vld [vmem:[%s12 + $0x1c] sm:$0xf]
    %1275 = vst [vmem:[#allocation1] ss:$4 sm:$0xff] %v912
    %s1276 = scalar_lea.vmem [#allocation1], 1
    %1277 = vst [vmem:[%s1276] ss:$4 sm:$0xff] %v920
    %s1278 = scalar_lea.vmem [#allocation1], 2
    %1279 = vst [vmem:[%s1278] ss:$4 sm:$0xff] %v928
    %s1280 = scalar_lea.vmem [#allocation1], 3
    %1281 = vst [vmem:[%s1280] ss:$4 sm:$0xff] %v936
    %s1282 = scalar_lea.vmem [#allocation1], 32
    %1283 = vst [vmem:[%s1282] ss:$4 sm:$0xff] %v914
    %s1284 = scalar_lea.vmem [#allocation1], 33
    %1285 = vst [vmem:[%s1284] ss:$4 sm:$0xff] %v922
    %s1286 = scalar_lea.vmem [#allocation1], 34
    %1287 = vst [vmem:[%s1286] ss:$4 sm:$0xff] %v930
    %s1288 = scalar_lea.vmem [#allocation1], 35
    %1289 = vst [vmem:[%s1288] ss:$4 sm:$0xff] %v938
    %v1290 = vld.sshfl [vmem:[#allocation1] sm:$0xff pattern:$0x73625140]
    %v1291 = vld.sshfl [vmem:[#allocation1 + $0x20] sm:$0xff pattern:$0x73625140]
    %v1294 = vpack.c.bf16 %v1291, %v1290
    %v1295 = vld [vmem:[%s13] sm:$0xf]
    %v1296 = vld [vmem:[%s13 + $0x4] sm:$0xf]
    %v1297 = vld [vmem:[%s13 + $0x8] sm:$0xf]
    %v1298 = vld [vmem:[%s13 + $0xc] sm:$0xf]
    %v1299 = vld [vmem:[%s13 + $0x10] sm:$0xf]
    %v1300 = vld [vmem:[%s13 + $0x14] sm:$0xf]
    %v1301 = vld [vmem:[%s13 + $0x18] sm:$0xf]
    %v1302 = vld [vmem:[%s13 + $0x1c] sm:$0xf]
    %v1311 = vunpack.c.l.b16 %v1295
    %v1312 = vunpack.c.l.b16 %v1296
    %v1313 = vunpack.c.l.b16 %v1297
    %v1314 = vunpack.c.l.b16 %v1298
    %v1315 = vunpack.c.l.b16 %v1299
    %v1316 = vunpack.c.l.b16 %v1300
    %v1317 = vunpack.c.l.b16 %v1301
    %v1318 = vunpack.c.l.b16 %v1302
    %v1319 = vpack.c.b16 %v1312, %v1311
    %v1320 = vpack.c.b16 %v1314, %v1313
    %v1321 = vpack.c.b16 %v1316, %v1315
    %v1322 = vpack.c.b16 %v1318, %v1317
    %v1328 = vsel %vm605, %v1294, 0
    %1330 = vmatpush.bf16.msra.mxu0 0
    %1331 = vmatpush.bf16.msra.mxu0 0
    %1332 = vmatpush.bf16.msra.mxu0 0
    %1333 = vmatpush.bf16.msra.mxu0 0
    %1334 = vmatpush.bf16.msra.mxu0 %v1322
    %1335 = vmatpush.bf16.msra.mxu0 %v1321
    %1336 = vmatpush.bf16.msra.mxu0 %v1320
    %1337 = vmatpush.bf16.msra.mxu0 %v1319
    %1338 = vmatmul.bf16.gmra.mxu0 %v1328
    %v1339 = vpop.f32.mrf.mxu0
    %v1340 = vadd.f32 0.0, %v1339
    %v1341 = vpop.f32.mrf.mxu0
    %v1342 = vadd.f32 0.0, %v1341
    %1343 = vdwg.mxu0
    %v1352 = vunpack.c.l.b16 %v1267
    %v1353 = vunpack.c.l.b16 %v1268
    %v1354 = vunpack.c.l.b16 %v1269
    %v1355 = vunpack.c.l.b16 %v1270
    %v1356 = vunpack.c.l.b16 %v1271
    %v1357 = vunpack.c.l.b16 %v1272
    %v1358 = vunpack.c.l.b16 %v1273
    %v1359 = vunpack.c.l.b16 %v1274
    %v1360 = vpack.c.b16 %v1353, %v1352
    %v1361 = vpack.c.b16 %v1355, %v1354
    %v1362 = vpack.c.b16 %v1357, %v1356
    %v1363 = vpack.c.b16 %v1359, %v1358
    %v1369 = vsel %vm605, %v1266, 0
    %1371 = vmatpush.bf16.msra.mxu0 0
    %1372 = vmatpush.bf16.msra.mxu0 0
    %1373 = vmatpush.bf16.msra.mxu0 0
    %1374 = vmatpush.bf16.msra.mxu0 0
    %1375 = vmatpush.bf16.msra.mxu0 %v1363
    %1376 = vmatpush.bf16.msra.mxu0 %v1362
    %1377 = vmatpush.bf16.msra.mxu0 %v1361
    %1378 = vmatpush.bf16.msra.mxu0 %v1360
    %1379 = vmatmul.bf16.gmra.mxu0 %v1369
    %v1380 = vpop.f32.mrf.mxu0
    %v1381 = vadd.f32 %v1340, %v1380
    %v1382 = vpop.f32.mrf.mxu0
    %v1383 = vadd.f32 %v1342, %v1382
    %1384 = vdwg.mxu0
    %v1385 = vld [vmem:[%s14] sm:$0x1]
    %v1387 = vperm.slane %v1385, 0
    %v1389 = vadd.f32 %v1381, %v1387
    %v1390 = vadd.f32 %v1383, %v1387
    %v1391 = vtanh.pop %v1389
    %v1392 = vtanh.pop %v1390
    %v1393 = vpack.c.bf16 %v1392, %v1391
    %v1394 = vld [vmem:[%s15] sm:$0xf]
    %v1395 = vld [vmem:[%s15 + $0x4] sm:$0xf]
    %v1396 = vld [vmem:[%s15 + $0x8] sm:$0xf]
    %v1397 = vld [vmem:[%s15 + $0xc] sm:$0xf]
    %v1398 = vld [vmem:[%s15 + $0x10] sm:$0xf]
    %v1399 = vld [vmem:[%s15 + $0x14] sm:$0xf]
    %v1400 = vld [vmem:[%s15 + $0x18] sm:$0xf]
    %v1401 = vld [vmem:[%s15 + $0x1c] sm:$0xf]
    %v1402 = vld [vmem:[%s16] sm:$0x1]
    %v1404 = vperm.slane %v1402, 0
    %v1414 = vunpack.c.l.b16 %v1394
    %v1415 = vunpack.c.l.b16 %v1395
    %v1416 = vunpack.c.l.b16 %v1396
    %v1417 = vunpack.c.l.b16 %v1397
    %v1418 = vunpack.c.l.b16 %v1398
    %v1419 = vunpack.c.l.b16 %v1399
    %v1420 = vunpack.c.l.b16 %v1400
    %v1421 = vunpack.c.l.b16 %v1401
    %v1422 = vpack.c.b16 %v1415, %v1414
    %v1423 = vpack.c.b16 %v1417, %v1416
    %v1424 = vpack.c.b16 %v1419, %v1418
    %v1425 = vpack.c.b16 %v1421, %v1420
    %v1431 = vsel %vm605, %v1393, 0
    %1433 = vmatpush.bf16.msra.mxu0 0
    %1434 = vmatpush.bf16.msra.mxu0 0
    %1435 = vmatpush.bf16.msra.mxu0 0
    %1436 = vmatpush.bf16.msra.mxu0 0
    %1437 = vmatpush.bf16.msra.mxu0 %v1425
    %1438 = vmatpush.bf16.msra.mxu0 %v1424
    %1439 = vmatpush.bf16.msra.mxu0 %v1423
    %1440 = vmatpush.bf16.msra.mxu0 %v1422
    %1441 = vmatmul.bf16.gmra.mxu0 %v1431
    %v1442 = vpop.f32.mrf.mxu0
    %v1443 = vadd.f32 %v1404, %v1442
    %v1444 = vpop.f32.mrf.mxu0
    %v1445 = vadd.f32 %v1404, %v1444
    %1446 = vdwg.mxu0
    %1447 = vst [vmem:[#allocation11] sm:$0xff] %v1443
    %1448 = vst [vmem:[#allocation11 + $0x8] sm:$0xff] %v1445
    // Predicated region
    $region86: #{tpu_custom_call.1} parent=1 // pred_check
      _
    $region87: #{tpu_custom_call.1} parent=1 // pred_check_branch
      %1450 = sbr.rel (0) target = $region89
    $region88: #{tpu_custom_call.1} parent=1 // pred_region
      %1452 = vsyncadd [#allocation5], 0
      %s1453 = sshll.u32 [#allocation11], 4
      %s1454 = int_to_ptr.vmem [resolvable:$true] %s1453
      %s1455 = sshll.u32 %s17, 4
      %s1456 = int_to_ptr.hbm [resolvable:$true] %s1455
      %1461 = dma.vmem_to_hbm [thread:$0]  %s1454, 256, %s1456, [#allocation5], 128, 128, 8
    $region89: #{tpu_custom_call.1} parent=1 // pred_fallthru
      _
    // Predicated region
    $region90: #{tpu_custom_call.1} parent=1 // pred_check
      _
    $region91: #{tpu_custom_call.1} parent=1 // pred_check_branch
      %1463 = sbr.rel (0) target = $region93
    $region92: #{tpu_custom_call.1} parent=1 // pred_region
      %1465 = vsyncadd [#allocation13], 0
      %s1466 = sshll.u32 [#allocation12], 4
      %s1467 = int_to_ptr.vmem [resolvable:$true] %s1466
      %s1468 = sshll.u32 %s18, 4
      %s1469 = int_to_ptr.hbm [resolvable:$true] %s1468
      %1474 = dma.vmem_to_hbm [thread:$0]  %s1467, 64, %s1469, [#allocation13], 32, 32, 2
    $region93: #{tpu_custom_call.1} parent=1 // pred_fallthru
      _
    // Predicated region
    $region94: #{tpu_custom_call.1} parent=1 // pred_check
      _
    $region95: #{tpu_custom_call.1} parent=1 // pred_check_branch
      %1476 = sbr.rel (0) target = $region97
    $region96: #{tpu_custom_call.1} parent=1 // pred_region
      %1478 = vsyncadd [#allocation13], 0
      %s1479 = sshll.u32 [#allocation14], 4
      %s1480 = int_to_ptr.vmem [resolvable:$true] %s1479
      %s1481 = sshll.u32 %s19, 4
      %s1482 = int_to_ptr.hbm [resolvable:$true] %s1481
      %1487 = dma.vmem_to_hbm [thread:$0]  %s1480, 256, %s1482, [#allocation13], 128, 128, 8
    $region97: #{tpu_custom_call.1} parent=1 // pred_fallthru
      _
    // Predicated region
    $region98: #{tpu_custom_call.1} parent=1 // pred_check
      _
    $region99: #{tpu_custom_call.1} parent=1 // pred_check_branch
      %1489 = sbr.rel (0) target = $region101
    $region100: #{tpu_custom_call.1} parent=1 // pred_region
      %1491 = dma.done [#allocation5], 256
    $region101: #{tpu_custom_call.1} parent=1 // pred_fallthru
      _
    // Predicated region
    $region102: #{tpu_custom_call.1} parent=1 // pred_check
      _
    $region103: #{tpu_custom_call.1} parent=1 // pred_check_branch
      %1493 = sbr.rel (0) target = $region105
    $region104: #{tpu_custom_call.1} parent=1 // pred_region
      %1495 = dma.done [#allocation13], 64
    $region105: #{tpu_custom_call.1} parent=1 // pred_fallthru
      _
    // Predicated region
    $region106: #{tpu_custom_call.1} parent=1 // pred_check
      _
    $region107: #{tpu_custom_call.1} parent=1 // pred_check_branch
      %1497 = sbr.rel (0) target = $region109
    $region108: #{tpu_custom_call.1} parent=1 // pred_region
      %1499 = dma.done [#allocation13], 256
    $region109: #{tpu_custom_call.1} parent=1 // pred_fallthru
      _
    %1500 = vsyncpa [#allocation4], 1
    %1501 = vsyncpa [#allocation7], 1
    %1502 = vsyncpa [#allocation10], 1
    %1503 = vsyncpa [#allocation5], 1
    %1504 = vsyncpa [#allocation13], 1

</llo_original>
